<compile_context>
chip_gen: v7x
topology: tpu7x:2x2x1
jax: 0.10.0
libtpu: 0.0.40
codegen_flags: <defaults>
</compile_context>

<pallas_src>
import functools

import jax
import jax.numpy as jnp
from jax.experimental import pallas as pl
from jax.experimental.pallas import tpu as pltpu


def _round_up(x, m):
    return (x + m - 1) // m * m


def _char_cnn_highway_kernel(ids_ref, lut_ref, bconv_ref,
                             wproj_ref, bproj_ref, wgate_ref, bgate_ref,
                             out_ref, *, conv_T, window_K, vocab_V):
    """One tile of TN words.

    ids_ref   : (TN, W)    int32   char ids (word-length axis in lanes, no padding dim)
    lut_ref   : (Fp, Ep)   bf16    folded char-embed x conv weight; row f = k*V + v
    bconv_ref : (1, Ep)    f32
    wproj_ref : (Ep, Ep)   bf16    highway proj weight (pre-transposed: h @ W)
    bproj_ref : (1, Ep)    f32
    wgate_ref : (Ep, Ep)   bf16
    bgate_ref : (1, Ep)    f32
    out_ref   : (TN, Ep)   f32
    """
    TN, _W = ids_ref.shape
    Fp, Ep = lut_ref.shape
    T, K, V = conv_T, window_K, vocab_V

    ids = ids_ref[...]                                               # (TN, W) int32

    # --- One-hot over the K-tap windows, built directly in the matmul layout:
    #       onehot[(n, t), k*V + v] = (ids[n, t + k] == v)
    #     One boolean compare per tap against a shared lane-iota, OR-combined,
    #     then a single cast to bf16 (no f32 select pass). ------------------------
    f_iota = jax.lax.broadcasted_iota(jnp.int32, (TN, T, Fp), 2)     # lane index f
    match = None
    for k in range(K):                                               # K static, unrolled
        wk = ids[:, k:k + T]                                         # (TN, T) window ids
        eq = (wk[:, :, None] + k * V) == f_iota                      # (TN, T, Fp) bool
        match = eq if match is None else (match | eq)
    onehot = match.astype(jnp.bfloat16).reshape(TN * T, Fp)          # T==8 -> cheap reshape

    # --- Fused char-embedding lookup + Conv1d: ONE matmul against the folded LUT.
    #     conv[n, t, e] = sum_k lut[k*V + ids[n, t+k], e]   (f32 accumulation) ------
    conv = jnp.dot(onehot, lut_ref[...],
                   preferred_element_type=jnp.float32)               # (TN*T, Ep)
    conv = conv.reshape(TN, T, Ep)

    # --- Max-over-time pool, then bias + ReLU.
    #     Exact reorder of max_t relu(c+b): the bias is constant over T and relu/max
    #     are monotone.  (Do NOT keep this reorder if the bias becomes per-position.)
    m = jnp.max(conv, axis=1)                                        # (TN, Ep)
    h = jnp.maximum(m + bconv_ref[...], 0.0)                         # (TN, Ep) f32

    # --- Highway (eval mode: dropout is identity).  Matmuls in bf16, f32 accum. ----
    hb = h.astype(jnp.bfloat16)
    proj = jnp.maximum(
        jnp.dot(hb, wproj_ref[...], preferred_element_type=jnp.float32) + bproj_ref[...],
        0.0)
    gate = jax.nn.sigmoid(
        jnp.dot(hb, wgate_ref[...], preferred_element_type=jnp.float32) + bgate_ref[...])
    out = gate * proj + (1.0 - gate) * h

    out_ref[...] = out.astype(out_ref.dtype)


def model_embeddings_forward(ids, emb_table, w_conv, b_conv,
                             w_proj, b_proj, w_gate, b_gate,
                             *, tile_n=256):
    """ids: int32 (S, B, W).  Returns (S, B, E) float32.

    tile_n: words per grid step.  Default 256 keeps per-tile temporaries (one-hot,
    f32 conv, output) at a few MB -> well under v5e's 16 MiB scoped-VMEM default and
    v7x's smaller VMEM; up to ~512 is fine on v6e/v7x.  TN is additionally capped so
    the grid has >=2 steps whenever N allows it (v7x megacore).
    """
    S, B, W = ids.shape
    V, C = emb_table.shape
    E, _, K = w_conv.shape
    T = W - K + 1                           # valid conv output length
    N = S * B

    # ---- Padded sizes for TPU-friendly layouts ---------------------------------
    EP = _round_up(E, 128)                  # lane-dense output / full MXU output lanes
    FP = _round_up(K * V, 128)              # folded contraction; K*V=150 -> 256 here
    half = _round_up((N + 1) // 2, 8)       # ensure >=2 grid steps when N > 8
    TN = max(8, min(_round_up(tile_n, 8), half))
    NP = _round_up(N, TN)                   # pad N; tail rows are discarded after the call

    # ---- Prepare inputs / weights ----------------------------------------------
    # ids: (S,B,W) -> (NP, W) int32.  No trailing singleton dim (it would lane-pad
    # 1 -> 128 in VMEM/HBM tiles).  Padded tail rows use index 0 and are sliced off.
    ids_flat = ids.reshape(N, W).astype(jnp.int32)
    ids_p = jnp.zeros((NP, W), jnp.int32).at[:N].set(ids_flat)

    # Folded LUT: lut[k*V + v, e] = emb_table[v, :] @ w_conv[e, :, k]  (f32 -> bf16).
    lut = jnp.einsum('vc,eck->kve', emb_table, w_conv)               # (K, V, E) f32
    lut_p = (jnp.zeros((FP, EP), jnp.float32)
             .at[:K * V, :E].set(lut.reshape(K * V, E))
             .astype(jnp.bfloat16))

    bconv_p = jnp.zeros((1, EP), jnp.float32).at[0, :E].set(b_conv)
    wproj_p = (jnp.zeros((EP, EP), jnp.float32).at[:E, :E].set(w_proj.T)
               .astype(jnp.bfloat16))
    bproj_p = jnp.zeros((1, EP), jnp.float32).at[0, :E].set(b_proj)
    wgate_p = (jnp.zeros((EP, EP), jnp.float32).at[:E, :E].set(w_gate.T)
               .astype(jnp.bfloat16))
    bgate_p = jnp.zeros((1, EP), jnp.float32).at[0, :E].set(b_gate)

    grid = (NP // TN,)
    kernel = functools.partial(_char_cnn_highway_kernel,
                               conv_T=T, window_K=K, vocab_V=V)

    out = pl.pallas_call(
        kernel,
        out_shape=jax.ShapeDtypeStruct((NP, EP), jnp.float32),
        grid_spec=pltpu.PrefetchScalarGridSpec(
            num_scalar_prefetch=0,
            grid=grid,
            in_specs=[
                pl.BlockSpec((TN, W), lambda i: (i, 0)),             # ids tile (streamed)
                pl.BlockSpec((FP, EP), lambda i: (0, 0)),            # folded LUT (resident)
                pl.BlockSpec((1, EP), lambda i: (0, 0)),             # conv bias
                pl.BlockSpec((EP, EP), lambda i: (0, 0)),            # proj weight (bf16)
                pl.BlockSpec((1, EP), lambda i: (0, 0)),             # proj bias
                pl.BlockSpec((EP, EP), lambda i: (0, 0)),            # gate weight (bf16)
                pl.BlockSpec((1, EP), lambda i: (0, 0)),             # gate bias
            ],
            out_specs=pl.BlockSpec((TN, EP), lambda i: (i, 0)),
        ),
        compiler_params=pltpu.CompilerParams(
            dimension_semantics=("parallel",)),
    )(ids_p, lut_p, bconv_p, wproj_p, bproj_p, wgate_p, bgate_p)

    return out[:N, :E].reshape(S, B, E)


def reference_forward(ids, emb_table, w_conv, b_conv,
                      w_proj, b_proj, w_gate, b_gate):
    """Pure-JAX reference mirroring the PyTorch forward (eval mode), with the same
    quantization choices as the kernel (bf16 folded LUT, bf16 highway matmuls), but
    computed via gathers / canonical relu->max ordering / unpadded shapes so it
    exercises an independent code path."""
    S, B, W = ids.shape
    V, C = emb_table.shape
    E, _, K = w_conv.shape
    T = W - K + 1
    N = S * B

    lut = jnp.einsum('vc,eck->kve', emb_table, w_conv)               # (K, V, E)
    lut = lut.astype(jnp.bfloat16).astype(jnp.float32)               # mirror kernel LUT quant

    idf = ids.reshape(N, W)
    conv = jnp.zeros((N, T, E), jnp.float32)
    for k in range(K):
        conv = conv + lut[k][idf[:, k:k + T]]                        # gather lookup per tap
    h = jnp.max(jax.nn.relu(conv + b_conv[None, None, :]), axis=1)   # canonical relu -> max

    hb = h.astype(jnp.bfloat16)
    proj = jax.nn.relu(
        jnp.dot(hb, w_proj.T.astype(jnp.bfloat16),
                preferred_element_type=jnp.float32) + b_proj)
    gate = jax.nn.sigmoid(
        jnp.dot(hb, w_gate.T.astype(jnp.bfloat16),
                preferred_element_type=jnp.float32) + b_gate)
    out = gate * proj + (1.0 - gate) * h
    return out.reshape(S, B, E)


if __name__ == "__main__":
    # Small shapes consistent with the module.
    S, B, W = 7, 5, 12           # sentence_length, batch_size, max_word_length
    V = 30                       # char vocab size
    C = 50                       # char_embed_size (fixed at 50 in the module)
    K = 5                        # window_size (fixed at 5 in the module)
    E = 32                       # embed_size
    PAD_IDX = 0

    key = jax.random.PRNGKey(0)
    k_ids, k_emb, k_wc, k_bc, k_wp, k_bp, k_wg, k_bg = jax.random.split(key, 8)

    ids = jax.random.randint(k_ids, (S, B, W), 0, V, dtype=jnp.int32)

    emb_table = 0.1 * jax.random.normal(k_emb, (V, C), dtype=jnp.float32)
    emb_table = emb_table.at[PAD_IDX].set(0.0)                       # padding_idx row is zero

    w_conv = 0.1 * jax.random.normal(k_wc, (E, C, K), dtype=jnp.float32)  # torch Conv1d weight
    b_conv = 0.1 * jax.random.normal(k_bc, (E,), dtype=jnp.float32)
    w_proj = 0.1 * jax.random.normal(k_wp, (E, E), dtype=jnp.float32)     # torch Linear weight
    b_proj = 0.1 * jax.random.normal(k_bp, (E,), dtype=jnp.float32)
    w_gate = 0.1 * jax.random.normal(k_wg, (E, E), dtype=jnp.float32)
    b_gate = 0.1 * jax.random.normal(k_bg, (E,), dtype=jnp.float32)

    # tile_n=16 forces a multi-step grid + tail padding at demo size (N=35 -> 48);
    # use the default 256 (or up to ~512) at realistic N.
    out = model_embeddings_forward(ids, emb_table, w_conv, b_conv,
                                   w_proj, b_proj, w_gate, b_gate, tile_n=16)
    out = jax.block_until_ready(out)

    ref = reference_forward(ids, emb_table, w_conv, b_conv,
                            w_proj, b_proj, w_gate, b_gate)

    assert out.shape == (S, B, E)
    err = jnp.max(jnp.abs(out - ref))
    assert jnp.allclose(out, ref, atol=1e-3, rtol=1e-3), f"mismatch vs reference, max err {err}"

    print("KERNEL_OK")
</pallas_src>

<mosaic_0001>
module attributes {stable_mosaic.version = 11 : i64} {
  func.func @_char_cnn_highway_kernel(%arg0: i32, %arg1: memref<16x12xi32, #tpu.memory_space<vmem>>, %arg2: memref<256x128xbf16, #tpu.memory_space<vmem>>, %arg3: memref<1x128xf32, #tpu.memory_space<vmem>>, %arg4: memref<128x128xbf16, #tpu.memory_space<vmem>>, %arg5: memref<1x128xf32, #tpu.memory_space<vmem>>, %arg6: memref<128x128xbf16, #tpu.memory_space<vmem>>, %arg7: memref<1x128xf32, #tpu.memory_space<vmem>>, %arg8: memref<16x128xf32, #tpu.memory_space<vmem>>) attributes {dimension_semantics = [#tpu.dimension_semantics<parallel>], iteration_bounds = array<i64: 3>, scalar_prefetch = 0 : i64, scratch_operands = 0 : i64, tpu.core_type = #tpu.core_type<tc>, window_params = [{transform_indices = @transform_0, window_bounds = array<i64: 16, 12>}, {pipeline_mode = #tpu.pipeline_mode<synchronous>, transform_indices = @transform_1, window_bounds = array<i64: 256, 128>}, {pipeline_mode = #tpu.pipeline_mode<synchronous>, transform_indices = @transform_2, window_bounds = array<i64: 1, 128>}, {pipeline_mode = #tpu.pipeline_mode<synchronous>, transform_indices = @transform_3, window_bounds = array<i64: 128, 128>}, {pipeline_mode = #tpu.pipeline_mode<synchronous>, transform_indices = @transform_4, window_bounds = array<i64: 1, 128>}, {pipeline_mode = #tpu.pipeline_mode<synchronous>, transform_indices = @transform_5, window_bounds = array<i64: 128, 128>}, {pipeline_mode = #tpu.pipeline_mode<synchronous>, transform_indices = @transform_6, window_bounds = array<i64: 1, 128>}, {transform_indices = @transform_7, window_bounds = array<i64: 16, 128>}]} {
    %c0 = arith.constant 0 : index
    %c0_0 = arith.constant 0 : index
    %0 = vector.load %arg1[%c0, %c0_0] : memref<16x12xi32, #tpu.memory_space<vmem>>, vector<16x12xi32>
    %1 = tpu.iota {dimensions = array<i32: 2>} : vector<16x8x256xi32>
    %2 = vector.extract_strided_slice %0 {offsets = [0, 0], sizes = [16, 8], strides = [1, 1]} : vector<16x12xi32> to vector<16x8xi32>
    %3 = vector.shape_cast %2 : vector<16x8xi32> to vector<16x8x1xi32>
    %c0_i32 = arith.constant 0 : i32
    %4 = vector.broadcast %c0_i32 : i32 to vector<16x8x1xi32>
    %5 = arith.addi %3, %4 : vector<16x8x1xi32>
    %6 = vector.broadcast %5 : vector<16x8x1xi32> to vector<16x8x256xi32>
    %7 = arith.cmpi eq, %6, %1 : vector<16x8x256xi32>
    %8 = vector.extract_strided_slice %0 {offsets = [0, 1], sizes = [16, 8], strides = [1, 1]} : vector<16x12xi32> to vector<16x8xi32>
    %9 = vector.shape_cast %8 : vector<16x8xi32> to vector<16x8x1xi32>
    %c30_i32 = arith.constant 30 : i32
    %10 = vector.broadcast %c30_i32 : i32 to vector<16x8x1xi32>
    %11 = arith.addi %9, %10 : vector<16x8x1xi32>
    %12 = vector.broadcast %11 : vector<16x8x1xi32> to vector<16x8x256xi32>
    %13 = arith.cmpi eq, %12, %1 : vector<16x8x256xi32>
    %14 = arith.ori %7, %13 : vector<16x8x256xi1>
    %15 = vector.extract_strided_slice %0 {offsets = [0, 2], sizes = [16, 8], strides = [1, 1]} : vector<16x12xi32> to vector<16x8xi32>
    %16 = vector.shape_cast %15 : vector<16x8xi32> to vector<16x8x1xi32>
    %c60_i32 = arith.constant 60 : i32
    %17 = vector.broadcast %c60_i32 : i32 to vector<16x8x1xi32>
    %18 = arith.addi %16, %17 : vector<16x8x1xi32>
    %19 = vector.broadcast %18 : vector<16x8x1xi32> to vector<16x8x256xi32>
    %20 = arith.cmpi eq, %19, %1 : vector<16x8x256xi32>
    %21 = arith.ori %14, %20 : vector<16x8x256xi1>
    %22 = vector.extract_strided_slice %0 {offsets = [0, 3], sizes = [16, 8], strides = [1, 1]} : vector<16x12xi32> to vector<16x8xi32>
    %23 = vector.shape_cast %22 : vector<16x8xi32> to vector<16x8x1xi32>
    %c90_i32 = arith.constant 90 : i32
    %24 = vector.broadcast %c90_i32 : i32 to vector<16x8x1xi32>
    %25 = arith.addi %23, %24 : vector<16x8x1xi32>
    %26 = vector.broadcast %25 : vector<16x8x1xi32> to vector<16x8x256xi32>
    %27 = arith.cmpi eq, %26, %1 : vector<16x8x256xi32>
    %28 = arith.ori %21, %27 : vector<16x8x256xi1>
    %29 = vector.extract_strided_slice %0 {offsets = [0, 4], sizes = [16, 8], strides = [1, 1]} : vector<16x12xi32> to vector<16x8xi32>
    %30 = vector.shape_cast %29 : vector<16x8xi32> to vector<16x8x1xi32>
    %c120_i32 = arith.constant 120 : i32
    %31 = vector.broadcast %c120_i32 : i32 to vector<16x8x1xi32>
    %32 = arith.addi %30, %31 : vector<16x8x1xi32>
    %33 = vector.broadcast %32 : vector<16x8x1xi32> to vector<16x8x256xi32>
    %34 = arith.cmpi eq, %33, %1 : vector<16x8x256xi32>
    %35 = arith.ori %28, %34 : vector<16x8x256xi1>
    %36 = arith.extui %35 : vector<16x8x256xi1> to vector<16x8x256xi32>
    %37 = arith.sitofp %36 : vector<16x8x256xi32> to vector<16x8x256xf32>
    %38 = arith.truncf %37 : vector<16x8x256xf32> to vector<16x8x256xbf16>
    %39 = vector.shape_cast %38 : vector<16x8x256xbf16> to vector<128x256xbf16>
    %c0_1 = arith.constant 0 : index
    %c0_2 = arith.constant 0 : index
    %40 = vector.load %arg2[%c0_1, %c0_2] : memref<256x128xbf16, #tpu.memory_space<vmem>>, vector<256x128xbf16>
    %cst = arith.constant dense<0.000000e+00> : vector<128x128xf32>
    %41 = tpu.matmul %39, %40, %cst {dimension_numbers = #tpu.dot_dimension_numbers<[1], [0], [0], [1], [0, 0, 1, 1], [], []>} : vector<128x256xbf16>, vector<256x128xbf16>, vector<128x128xf32> -> vector<128x128xf32>
    %42 = vector.shape_cast %41 : vector<128x128xf32> to vector<16x8x128xf32>
    %cst_3 = arith.constant dense<0xFF800000> : vector<16x128xf32>
    %43 = vector.multi_reduction <maximumf>, %42, %cst_3 [1] : vector<16x8x128xf32> to vector<16x128xf32>
    %c0_4 = arith.constant 0 : index
    %c0_5 = arith.constant 0 : index
    %44 = vector.load %arg3[%c0_4, %c0_5] : memref<1x128xf32, #tpu.memory_space<vmem>>, vector<1x128xf32>
    %45 = vector.broadcast %44 : vector<1x128xf32> to vector<16x128xf32>
    %46 = arith.addf %43, %45 : vector<16x128xf32>
    %cst_6 = arith.constant 0.000000e+00 : f32
    %47 = vector.broadcast %cst_6 : f32 to vector<16x128xf32>
    %48 = arith.maximumf %46, %47 : vector<16x128xf32>
    %49 = arith.truncf %48 : vector<16x128xf32> to vector<16x128xbf16>
    %c0_7 = arith.constant 0 : index
    %c0_8 = arith.constant 0 : index
    %50 = vector.load %arg4[%c0_7, %c0_8] : memref<128x128xbf16, #tpu.memory_space<vmem>>, vector<128x128xbf16>
    %cst_9 = arith.constant dense<0.000000e+00> : vector<16x128xf32>
    %51 = tpu.matmul %49, %50, %cst_9 {dimension_numbers = #tpu.dot_dimension_numbers<[1], [0], [0], [1], [0, 0, 1, 1], [], []>} : vector<16x128xbf16>, vector<128x128xbf16>, vector<16x128xf32> -> vector<16x128xf32>
    %c0_10 = arith.constant 0 : index
    %c0_11 = arith.constant 0 : index
    %52 = vector.load %arg5[%c0_10, %c0_11] : memref<1x128xf32, #tpu.memory_space<vmem>>, vector<1x128xf32>
    %53 = vector.broadcast %52 : vector<1x128xf32> to vector<16x128xf32>
    %54 = arith.addf %51, %53 : vector<16x128xf32>
    %cst_12 = arith.constant 0.000000e+00 : f32
    %55 = vector.broadcast %cst_12 : f32 to vector<16x128xf32>
    %56 = arith.maximumf %54, %55 : vector<16x128xf32>
    %c0_13 = arith.constant 0 : index
    %c0_14 = arith.constant 0 : index
    %57 = vector.load %arg6[%c0_13, %c0_14] : memref<128x128xbf16, #tpu.memory_space<vmem>>, vector<128x128xbf16>
    %cst_15 = arith.constant dense<0.000000e+00> : vector<16x128xf32>
    %58 = tpu.matmul %49, %57, %cst_15 {dimension_numbers = #tpu.dot_dimension_numbers<[1], [0], [0], [1], [0, 0, 1, 1], [], []>} : vector<16x128xbf16>, vector<128x128xbf16>, vector<16x128xf32> -> vector<16x128xf32>
    %c0_16 = arith.constant 0 : index
    %c0_17 = arith.constant 0 : index
    %59 = vector.load %arg7[%c0_16, %c0_17] : memref<1x128xf32, #tpu.memory_space<vmem>>, vector<1x128xf32>
    %60 = vector.broadcast %59 : vector<1x128xf32> to vector<16x128xf32>
    %61 = arith.addf %58, %60 : vector<16x128xf32>
    %62 = arith.negf %61 : vector<16x128xf32>
    %63 = math.exp %62 : vector<16x128xf32>
    %cst_18 = arith.constant 1.000000e+00 : f32
    %64 = vector.broadcast %cst_18 : f32 to vector<16x128xf32>
    %65 = arith.addf %64, %63 : vector<16x128xf32>
    %66 = arith.divf %64, %65 : vector<16x128xf32>
    %67 = arith.mulf %66, %56 : vector<16x128xf32>
    %cst_19 = arith.constant 1.000000e+00 : f32
    %68 = vector.broadcast %cst_19 : f32 to vector<16x128xf32>
    %69 = arith.subf %68, %66 : vector<16x128xf32>
    %70 = arith.mulf %69, %48 : vector<16x128xf32>
    %71 = arith.addf %67, %70 : vector<16x128xf32>
    %c0_20 = arith.constant 0 : index
    %c0_21 = arith.constant 0 : index
    %72 = vector.load %arg8[%c0_20, %c0_21] : memref<16x128xf32, #tpu.memory_space<vmem>>, vector<16x128xf32>
    tpu.vector_store %arg8[%c0_20, %c0_21], %71 {strides = array<i32>} : memref<16x128xf32, #tpu.memory_space<vmem>>, vector<16x128xf32>,
    return
  }
  func.func @transform_0(%arg0: i32) -> (i32, i32) {
    %c0_i32 = arith.constant 0 : i32
    %c0_i32_0 = arith.constant 0 : i32
    return %arg0, %c0_i32 : i32, i32
  }
  func.func @transform_1(%arg0: i32) -> (i32, i32) {
    %c0_i32 = arith.constant 0 : i32
    %c0_i32_0 = arith.constant 0 : i32
    %c0_i32_1 = arith.constant 0 : i32
    return %c0_i32, %c0_i32_0 : i32, i32
  }
  func.func @transform_2(%arg0: i32) -> (i32, i32) {
    %c0_i32 = arith.constant 0 : i32
    %c0_i32_0 = arith.constant 0 : i32
    %c0_i32_1 = arith.constant 0 : i32
    return %c0_i32, %c0_i32_0 : i32, i32
  }
  func.func @transform_3(%arg0: i32) -> (i32, i32) {
    %c0_i32 = arith.constant 0 : i32
    %c0_i32_0 = arith.constant 0 : i32
    %c0_i32_1 = arith.constant 0 : i32
    return %c0_i32, %c0_i32_0 : i32, i32
  }
  func.func @transform_4(%arg0: i32) -> (i32, i32) {
    %c0_i32 = arith.constant 0 : i32
    %c0_i32_0 = arith.constant 0 : i32
    %c0_i32_1 = arith.constant 0 : i32
    return %c0_i32, %c0_i32_0 : i32, i32
  }
  func.func @transform_5(%arg0: i32) -> (i32, i32) {
    %c0_i32 = arith.constant 0 : i32
    %c0_i32_0 = arith.constant 0 : i32
    %c0_i32_1 = arith.constant 0 : i32
    return %c0_i32, %c0_i32_0 : i32, i32
  }
  func.func @transform_6(%arg0: i32) -> (i32, i32) {
    %c0_i32 = arith.constant 0 : i32
    %c0_i32_0 = arith.constant 0 : i32
    %c0_i32_1 = arith.constant 0 : i32
    return %c0_i32, %c0_i32_0 : i32, i32
  }
  func.func @transform_7(%arg0: i32) -> (i32, i32) {
    %c0_i32 = arith.constant 0 : i32
    %c0_i32_0 = arith.constant 0 : i32
    return %arg0, %c0_i32 : i32, i32
  }
}

</mosaic_0001>

<llo_original>
// kernel: tpu_custom_call.1
$region0: #{tpu_custom_call.1}
  #allocation0 [shape = 'u32[]', space=smem, size = 0x4, offset = 0x4, fixed_abs, tag = 'smem constant byte address 0x4 - core index']
  #allocation1 [shape = 'u32[144,128]{1,0:T(1,128)}', space=vmem, size = 0x12000, scoped, tag = 'internal scratch']
  %s0 = inlined_call_operand.vmem [shape: s32[48,12], index: 0, kind: input, shape index: {}]
  %s1 = inlined_call_operand.hbm [shape: bf16[256,128], index: 1, kind: input, shape index: {}]
  %s2 = inlined_call_operand.vmem [shape: f32[1,128], index: 2, kind: input, shape index: {}]
  %s3 = inlined_call_operand.vmem [shape: bf16[128,128], index: 3, kind: input, shape index: {}]
  %s4 = inlined_call_operand.vmem [shape: f32[1,128], index: 4, kind: input, shape index: {}]
  %s5 = inlined_call_operand.hbm [shape: bf16[128,128], index: 5, kind: input, shape index: {}]
  %s6 = inlined_call_operand.vmem [shape: f32[1,128], index: 6, kind: input, shape index: {}]
  %s7 = inlined_call_operand.hbm [shape: f32[48,128], index: 7, kind: output, shape index: {}]
  %s8 = sld [smem:[#allocation0]]
  $region69: #{tpu_custom_call.1} parent=0
    _
  %s10 = ssub.s32 1, %s8
  %s11 = scalar_select 0, %s10, %s8
  $region1: #{tpu_custom_call.1} parent=0
    #allocation2 [shape = 'u8[65536]{0}', space=vmem, size = 0x10000, scoped, tag = 'input window, operand 1, single buffered']
    #allocation3 [shape = 's32[2]{0}', space=sflag, size = 0x8, scoped, tag = 'scoped memory for tpu_custom_call.1']
    #allocation4 [shape = 's32[2]{0}', space=sflag, size = 0x8, scoped, tag = 'scoped memory for tpu_custom_call.1']
    #allocation5 [shape = 'u8[32768]{0}', space=vmem, size = 0x8000, scoped, tag = 'input window, operand 5, single buffered']
    #allocation6 [shape = 's32[1]{0}', space=sflag, size = 0x4, scoped, tag = 'scoped memory for tpu_custom_call.1']
    #allocation7 [shape = 'u8[16384]{0}', space=vmem, size = 0x4000, scoped, tag = 'output window, operand 0']
    %12 = vsyncpa [#allocation3], 0
    %13 = vsyncpa [#allocation6], 0
    %14 = vsyncpa [#allocation4], 0
    %s15 = scalar_lea.sflag [#allocation4], 1
    %16 = vsyncpa %s15, 0
    loop: start=0, step=1, limit=5
    $region2: #{tpu_custom_call.1} parent=1 // loop_pre_header
      _
    $region3: #{tpu_custom_call.1} parent=1 // loop_header
      %s18 = sphi 0, %s22
      %p19 = scmp.ge.s32.totalorder %s18, 5
      %s28 = sphi 0, %s30
      %s31 = sphi 0, %s28
      %s32 = sphi 0, %s31
      %s48 = sphi 0, %s32
      %s52 = sphi 0, %s52
      %s54 = sphi 0, %s52
      %s55 = sphi 0, %s54
      %s69 = sphi 0, %s55
      %s73 = sphi 0, %s73
      %s75 = sphi 0, %s73
      %s76 = sphi 0, %s75
      %s90 = sphi 0, %s76
      %s94 = sphi 0, %s94
      %s96 = sphi 0, %s94
      %s97 = sphi 0, %s96
      %s111 = sphi 0, %s97
      %s115 = sphi 0, %s115
      %s117 = sphi 0, %s115
      %s118 = sphi 0, %s117
      %s132 = sphi 0, %s118
      %s136 = sphi 0, %s136
      %s138 = sphi 0, %s136
      %s139 = sphi 0, %s138
      %s153 = sphi 0, %s139
      %s157 = sphi 0, %s157
      %s159 = sphi 0, %s157
      %s160 = sphi 0, %s159
      %s174 = sphi 0, %s160
      %s180 = sphi 0, %s182
      %s183 = sphi 0, %s180
      %s184 = sphi 0, %s183
      %s200 = sphi 0, %s184
    $region4: #{tpu_custom_call.1} parent=1 // loop_header_branch
      %21 = sbr.rel (%p19) target = $region8
    $region5: #{tpu_custom_call.1} parent=1 // loop_body
      %s23 = ssub.s32 %s18, 1
      %s24 = ssub.s32 %s18, 2
      %s25 = sadd.s32 %s18, 1
      %s26 = ssub.s32 %s18, %s25
      %p27 = scmp.eq.s32.totalorder %s26, 0
      %s29 = sadd.s32 %s28, 1
      %s30 = scalar_select %p27, %s28, %s29
      %p33 = pneg %p27
      %p34 = scmp.eq.s32.totalorder %s18, 2
      %p35 = por %p33, %p34
      %p36 = scmp.ne.s32.totalorder %s28, %s31
      %p37 = scmp.eq.s32.totalorder %s18, 0
      %p38 = por %p36, %p37
      %p39 = scmp.ne.s32.totalorder %s28, %s31
      %p40 = scmp.eq.s32.totalorder %s23, 2
      %p41 = por %p39, %p40
      %p42 = scmp.ne.s32.totalorder %s31, %s32
      %p43 = scmp.eq.s32.totalorder %s23, 0
      %p44 = por %p42, %p43
      %p45 = scmp.ne.s32.totalorder %s31, %s32
      %p46 = scmp.eq.s32.totalorder %s24, 2
      %p47 = por %p45, %p46
      %p49 = scmp.ne.s32.totalorder %s32, %s48
      %p50 = scmp.eq.s32.totalorder %s24, 0
      %p51 = por %p49, %p50
      %s53 = sadd.s32 %s52, 1
      %p56 = scmp.eq.s32.totalorder %s18, 2
      %p57 = scmp.ne.s32.totalorder %s52, %s54
      %p58 = scmp.eq.s32.totalorder %s18, 0
      %p59 = por %p57, %p58
      %p60 = scmp.ne.s32.totalorder %s52, %s54
      %p61 = scmp.eq.s32.totalorder %s23, 2
      %p62 = por %p60, %p61
      %p63 = scmp.ne.s32.totalorder %s54, %s55
      %p64 = scmp.eq.s32.totalorder %s23, 0
      %p65 = por %p63, %p64
      %p66 = scmp.ne.s32.totalorder %s54, %s55
      %p67 = scmp.eq.s32.totalorder %s24, 2
      %p68 = por %p66, %p67
      %p70 = scmp.ne.s32.totalorder %s55, %s69
      %p71 = scmp.eq.s32.totalorder %s24, 0
      %p72 = por %p70, %p71
      %s74 = sadd.s32 %s73, 1
      %p77 = scmp.eq.s32.totalorder %s18, 2
      %p78 = scmp.ne.s32.totalorder %s73, %s75
      %p79 = scmp.eq.s32.totalorder %s18, 0
      %p80 = por %p78, %p79
      %p81 = scmp.ne.s32.totalorder %s73, %s75
      %p82 = scmp.eq.s32.totalorder %s23, 2
      %p83 = por %p81, %p82
      %p84 = scmp.ne.s32.totalorder %s75, %s76
      %p85 = scmp.eq.s32.totalorder %s23, 0
      %p86 = por %p84, %p85
      %p87 = scmp.ne.s32.totalorder %s75, %s76
      %p88 = scmp.eq.s32.totalorder %s24, 2
      %p89 = por %p87, %p88
      %p91 = scmp.ne.s32.totalorder %s76, %s90
      %p92 = scmp.eq.s32.totalorder %s24, 0
      %p93 = por %p91, %p92
      %s95 = sadd.s32 %s94, 1
      %p98 = scmp.eq.s32.totalorder %s18, 2
      %p99 = scmp.ne.s32.totalorder %s94, %s96
      %p100 = scmp.eq.s32.totalorder %s18, 0
      %p101 = por %p99, %p100
      %p102 = scmp.ne.s32.totalorder %s94, %s96
      %p103 = scmp.eq.s32.totalorder %s23, 2
      %p104 = por %p102, %p103
      %p105 = scmp.ne.s32.totalorder %s96, %s97
      %p106 = scmp.eq.s32.totalorder %s23, 0
      %p107 = por %p105, %p106
      %p108 = scmp.ne.s32.totalorder %s96, %s97
      %p109 = scmp.eq.s32.totalorder %s24, 2
      %p110 = por %p108, %p109
      %p112 = scmp.ne.s32.totalorder %s97, %s111
      %p113 = scmp.eq.s32.totalorder %s24, 0
      %p114 = por %p112, %p113
      %s116 = sadd.s32 %s115, 1
      %p119 = scmp.eq.s32.totalorder %s18, 2
      %p120 = scmp.ne.s32.totalorder %s115, %s117
      %p121 = scmp.eq.s32.totalorder %s18, 0
      %p122 = por %p120, %p121
      %p123 = scmp.ne.s32.totalorder %s115, %s117
      %p124 = scmp.eq.s32.totalorder %s23, 2
      %p125 = por %p123, %p124
      %p126 = scmp.ne.s32.totalorder %s117, %s118
      %p127 = scmp.eq.s32.totalorder %s23, 0
      %p128 = por %p126, %p127
      %p129 = scmp.ne.s32.totalorder %s117, %s118
      %p130 = scmp.eq.s32.totalorder %s24, 2
      %p131 = por %p129, %p130
      %p133 = scmp.ne.s32.totalorder %s118, %s132
      %p134 = scmp.eq.s32.totalorder %s24, 0
      %p135 = por %p133, %p134
      %s137 = sadd.s32 %s136, 1
      %p140 = scmp.eq.s32.totalorder %s18, 2
      %p141 = scmp.ne.s32.totalorder %s136, %s138
      %p142 = scmp.eq.s32.totalorder %s18, 0
      %p143 = por %p141, %p142
      %p144 = scmp.ne.s32.totalorder %s136, %s138
      %p145 = scmp.eq.s32.totalorder %s23, 2
      %p146 = por %p144, %p145
      %p147 = scmp.ne.s32.totalorder %s138, %s139
      %p148 = scmp.eq.s32.totalorder %s23, 0
      %p149 = por %p147, %p148
      %p150 = scmp.ne.s32.totalorder %s138, %s139
      %p151 = scmp.eq.s32.totalorder %s24, 2
      %p152 = por %p150, %p151
      %p154 = scmp.ne.s32.totalorder %s139, %s153
      %p155 = scmp.eq.s32.totalorder %s24, 0
      %p156 = por %p154, %p155
      %s158 = sadd.s32 %s157, 1
      %p161 = scmp.eq.s32.totalorder %s18, 2
      %p162 = scmp.ne.s32.totalorder %s157, %s159
      %p163 = scmp.eq.s32.totalorder %s18, 0
      %p164 = por %p162, %p163
      %p165 = scmp.ne.s32.totalorder %s157, %s159
      %p166 = scmp.eq.s32.totalorder %s23, 2
      %p167 = por %p165, %p166
      %p168 = scmp.ne.s32.totalorder %s159, %s160
      %p169 = scmp.eq.s32.totalorder %s23, 0
      %p170 = por %p168, %p169
      %p171 = scmp.ne.s32.totalorder %s159, %s160
      %p172 = scmp.eq.s32.totalorder %s24, 2
      %p173 = por %p171, %p172
      %p175 = scmp.ne.s32.totalorder %s160, %s174
      %p176 = scmp.eq.s32.totalorder %s24, 0
      %p177 = por %p175, %p176
      %s178 = ssub.s32 %s18, %s25
      %p179 = scmp.eq.s32.totalorder %s178, 0
      %s181 = sadd.s32 %s180, 1
      %s182 = scalar_select %p179, %s180, %s181
      %p185 = pneg %p179
      %p186 = scmp.eq.s32.totalorder %s18, 2
      %p187 = por %p185, %p186
      %p188 = scmp.ne.s32.totalorder %s180, %s183
      %p189 = scmp.eq.s32.totalorder %s18, 0
      %p190 = por %p188, %p189
      %p191 = scmp.ne.s32.totalorder %s180, %s183
      %p192 = scmp.eq.s32.totalorder %s23, 2
      %p193 = por %p191, %p192
      %p194 = scmp.ne.s32.totalorder %s183, %s184
      %p195 = scmp.eq.s32.totalorder %s23, 0
      %p196 = por %p194, %p195
      %p197 = scmp.ne.s32.totalorder %s183, %s184
      %p198 = scmp.eq.s32.totalorder %s24, 2
      %p199 = por %p197, %p198
      %p201 = scmp.ne.s32.totalorder %s184, %s200
      %p202 = scmp.eq.s32.totalorder %s24, 0
      %p203 = por %p201, %p202
      %p204 = scmp.le.s32.totalorder 1, %s18
      %p205 = scmp.lt.s32.totalorder %s18, 4
      %p206 = pnand %p204, %p205
      %p207 = pneg %p206
      // Predicated region
      $region9: #{tpu_custom_call.1} parent=5 // pred_check
        _
      $region10: #{tpu_custom_call.1} parent=5 // pred_check_branch
        %209 = sbr.rel (%p206) target = $region12
      $region11: #{tpu_custom_call.1} parent=5 // pred_region
        %s210 = ssub.s32 %s18, 1
        // Predicated region
        $region13: #{tpu_custom_call.1} parent=11 // pred_check
          %p211 = pneg %p65
        $region14: #{tpu_custom_call.1} parent=11 // pred_check_branch
          %213 = sbr.rel (%p211) target = $region16
        $region15: #{tpu_custom_call.1} parent=11 // pred_region
          %s215 = ssub.s32 2048, 2048
          %216 = vsyncadd [#allocation3], %s215
          %s217 = sshll.u32 [#allocation2], 4
          %s218 = int_to_ptr.vmem [resolvable:$true] %s217
          %223 = dma.hbm_to_vmem [thread:$0]  %s1, 2048, %s218, [#allocation3], 64, 64, 4
        $region16: #{tpu_custom_call.1} parent=11 // pred_fallthru
          _
        // Predicated region
        $region17: #{tpu_custom_call.1} parent=11 // pred_check
          %p224 = pneg %p86
        $region18: #{tpu_custom_call.1} parent=11 // pred_check_branch
          %226 = sbr.rel (%p224) target = $region20
        $region19: #{tpu_custom_call.1} parent=11 // pred_region
          _
        $region20: #{tpu_custom_call.1} parent=11 // pred_fallthru
          _
        // Predicated region
        $region21: #{tpu_custom_call.1} parent=11 // pred_check
          %p227 = pneg %p107
        $region22: #{tpu_custom_call.1} parent=11 // pred_check_branch
          %229 = sbr.rel (%p227) target = $region24
        $region23: #{tpu_custom_call.1} parent=11 // pred_region
          _
        $region24: #{tpu_custom_call.1} parent=11 // pred_fallthru
          _
        // Predicated region
        $region25: #{tpu_custom_call.1} parent=11 // pred_check
          %p230 = pneg %p128
        $region26: #{tpu_custom_call.1} parent=11 // pred_check_branch
          %232 = sbr.rel (%p230) target = $region28
        $region27: #{tpu_custom_call.1} parent=11 // pred_region
          _
        $region28: #{tpu_custom_call.1} parent=11 // pred_fallthru
          _
        // Predicated region
        $region29: #{tpu_custom_call.1} parent=11 // pred_check
          %p233 = pneg %p149
        $region30: #{tpu_custom_call.1} parent=11 // pred_check_branch
          %235 = sbr.rel (%p233) target = $region32
        $region31: #{tpu_custom_call.1} parent=11 // pred_region
          %s237 = ssub.s32 1024, 1024
          %238 = vsyncadd [#allocation6], %s237
          %s239 = sshll.u32 [#allocation5], 4
          %s240 = int_to_ptr.vmem [resolvable:$true] %s239
          %245 = dma.hbm_to_vmem [thread:$0]  %s5, 1024, %s240, [#allocation6], 64, 64, 4
        $region32: #{tpu_custom_call.1} parent=11 // pred_fallthru
          _
        // Predicated region
        $region33: #{tpu_custom_call.1} parent=11 // pred_check
          %p246 = pneg %p170
        $region34: #{tpu_custom_call.1} parent=11 // pred_check_branch
          %248 = sbr.rel (%p246) target = $region36
        $region35: #{tpu_custom_call.1} parent=11 // pred_region
          _
        $region36: #{tpu_custom_call.1} parent=11 // pred_fallthru
          _
      $region12: #{tpu_custom_call.1} parent=5 // pred_fallthru
        _
      %p249 = scmp.lt.s32.totalorder %s18, 3
      // Predicated region
      $region37: #{tpu_custom_call.1} parent=5 // pred_check
        %p250 = pneg %p249
      $region38: #{tpu_custom_call.1} parent=5 // pred_check_branch
        %252 = sbr.rel (%p250) target = $region40
      $region39: #{tpu_custom_call.1} parent=5 // pred_region
        // Predicated region
        $region41: #{tpu_custom_call.1} parent=39 // pred_check
          %p253 = pneg %p38
        $region42: #{tpu_custom_call.1} parent=39 // pred_check_branch
          %255 = sbr.rel (%p253) target = $region44
        $region43: #{tpu_custom_call.1} parent=39 // pred_region
          %s256 = smul.u32 2, %s18
          %p257 = scmp.lt.s32.totalorder %s256, 5
          %s258 = scalar_select %p257, %s256, 5
          %s259 = smul.addr %s258, 8
          %s260 = scalar_lea.vmem %s0, %s259
          %s261 = smul.u32 2, %s18
        $region44: #{tpu_custom_call.1} parent=39 // pred_fallthru
          _
      $region40: #{tpu_custom_call.1} parent=5 // pred_fallthru
        _
      %p262 = scmp.le.s32.totalorder 1, %s18
      %p263 = scmp.lt.s32.totalorder %s18, 4
      %p264 = pnand %p262, %p263
      %p265 = pneg %p264
      // Predicated region
      $region45: #{tpu_custom_call.1} parent=5 // pred_check
        _
      $region46: #{tpu_custom_call.1} parent=5 // pred_check_branch
        %267 = sbr.rel (%p264) target = $region48
      $region47: #{tpu_custom_call.1} parent=5 // pred_region
        %s268 = ssub.s32 %s18, 1
        // Predicated region
        $region49: #{tpu_custom_call.1} parent=47 // pred_check
          %p269 = pneg %p65
        $region50: #{tpu_custom_call.1} parent=47 // pred_check_branch
          %271 = sbr.rel (%p269) target = $region52
        $region51: #{tpu_custom_call.1} parent=47 // pred_region
          %272 = dma.done [#allocation3], 2048
        $region52: #{tpu_custom_call.1} parent=47 // pred_fallthru
          _
        // Predicated region
        $region53: #{tpu_custom_call.1} parent=47 // pred_check
          %p273 = pneg %p149
        $region54: #{tpu_custom_call.1} parent=47 // pred_check_branch
          %275 = sbr.rel (%p273) target = $region56
        $region55: #{tpu_custom_call.1} parent=47 // pred_region
          %276 = dma.done [#allocation6], 1024
        $region56: #{tpu_custom_call.1} parent=47 // pred_fallthru
          _
        %s277 = smul.u32 2, %s23
        %p278 = scmp.lt.s32.totalorder %s277, 5
        %s279 = scalar_select %p278, %s277, 5
        %s280 = smul.addr %s279, 8
        %s281 = scalar_lea.vmem %s0, %s280
        %p282 = pneg %p44
        %p283 = pneg %p41
        %p284 = pneg %p65
        %p285 = pneg %p62
        %p286 = pneg %p86
        %p287 = pneg %p83
        %p288 = pneg %p107
        %p289 = pneg %p104
        %p290 = pneg %p128
        %p291 = pneg %p125
        %p292 = pneg %p149
        %p293 = pneg %p146
        %p294 = pneg %p170
        %p295 = pneg %p167
        %p296 = pneg %p196
        %p297 = pneg %p193
        %s298 = sand.u32 %s183, 1
        %s299 = scalar_lea.sflag [#allocation4], %s298
        %s300 = sand.u32 %s183, 1
        %s301 = smul.addr %s300, 16
        %s302 = scalar_lea.vmem [#allocation7], %s301
        %s303 = smul.u32 2, %s23
        %p304 = scmp.lt.s32.totalorder %s303, 5
        %s305 = scalar_select %p304, %s303, 5
        %s306 = smul.addr %s305, 8
        %s307 = scalar_lea.vmem %s0, %s306
        %s308 = smul.u32 2, %s23
        %s309 = smul.u32 2, %s23
        %v311 = vld [vmem:[%s307] sm:$0xff]
        %v312 = vld [vmem:[%s307 + $0x8] sm:$0xff]
        %v313 = vlaneseq
        %v314 = vand.u32 %v313, 127
        %v315 = vadd.s32 %v314, 128
        %v316 = vlaneseq
        %v317 = vshrl.u32 %v316, 7
        %v318 = vsub.s32 0, %v317
        %v319 = vrot.slane %v311, %v318
        %321 = vbcast.lane.b32.xlu0 %v319, 256
        %v322 = vpop.permute.xlu0 %321
        %v323 = vlaneseq
        %v324 = vshrl.u32 %v323, 7
        %v325 = vsub.s32 1, %v324
        %v326 = vrot.slane %v311, %v325
        %328 = vbcast.lane.b32.xlu0 %v326, 256
        %v329 = vpop.permute.xlu0 %328
        %v330 = vlaneseq
        %v331 = vshrl.u32 %v330, 7
        %v332 = vsub.s32 2, %v331
        %v333 = vrot.slane %v311, %v332
        %335 = vbcast.lane.b32.xlu0 %v333, 256
        %v336 = vpop.permute.xlu0 %335
        %v337 = vlaneseq
        %v338 = vshrl.u32 %v337, 7
        %v339 = vsub.s32 3, %v338
        %v340 = vrot.slane %v311, %v339
        %342 = vbcast.lane.b32.xlu0 %v340, 256
        %v343 = vpop.permute.xlu0 %342
        %v344 = vlaneseq
        %v345 = vshrl.u32 %v344, 7
        %v346 = vsub.s32 4, %v345
        %v347 = vrot.slane %v311, %v346
        %349 = vbcast.lane.b32.xlu0 %v347, 256
        %v350 = vpop.permute.xlu0 %349
        %v351 = vlaneseq
        %v352 = vshrl.u32 %v351, 7
        %v353 = vsub.s32 5, %v352
        %v354 = vrot.slane %v311, %v353
        %356 = vbcast.lane.b32.xlu0 %v354, 256
        %v357 = vpop.permute.xlu0 %356
        %v358 = vlaneseq
        %v359 = vshrl.u32 %v358, 7
        %v360 = vsub.s32 6, %v359
        %v361 = vrot.slane %v311, %v360
        %363 = vbcast.lane.b32.xlu0 %v361, 256
        %v364 = vpop.permute.xlu0 %363
        %v365 = vlaneseq
        %v366 = vshrl.u32 %v365, 7
        %v367 = vsub.s32 7, %v366
        %v368 = vrot.slane %v311, %v367
        %370 = vbcast.lane.b32.xlu0 %v368, 256
        %v371 = vpop.permute.xlu0 %370
        %v372 = vlaneseq
        %v373 = vshrl.u32 %v372, 7
        %v374 = vsub.s32 0, %v373
        %v375 = vrot.slane %v312, %v374
        %377 = vbcast.lane.b32.xlu0 %v375, 256
        %v378 = vpop.permute.xlu0 %377
        %v379 = vlaneseq
        %v380 = vshrl.u32 %v379, 7
        %v381 = vsub.s32 1, %v380
        %v382 = vrot.slane %v312, %v381
        %384 = vbcast.lane.b32.xlu0 %v382, 256
        %v385 = vpop.permute.xlu0 %384
        %v386 = vlaneseq
        %v387 = vshrl.u32 %v386, 7
        %v388 = vsub.s32 2, %v387
        %v389 = vrot.slane %v312, %v388
        %391 = vbcast.lane.b32.xlu0 %v389, 256
        %v392 = vpop.permute.xlu0 %391
        %v393 = vlaneseq
        %v394 = vshrl.u32 %v393, 7
        %v395 = vsub.s32 3, %v394
        %v396 = vrot.slane %v312, %v395
        %398 = vbcast.lane.b32.xlu0 %v396, 256
        %v399 = vpop.permute.xlu0 %398
        %v400 = vlaneseq
        %v401 = vshrl.u32 %v400, 7
        %v402 = vsub.s32 4, %v401
        %v403 = vrot.slane %v312, %v402
        %405 = vbcast.lane.b32.xlu0 %v403, 256
        %v406 = vpop.permute.xlu0 %405
        %v407 = vlaneseq
        %v408 = vshrl.u32 %v407, 7
        %v409 = vsub.s32 5, %v408
        %v410 = vrot.slane %v312, %v409
        %412 = vbcast.lane.b32.xlu0 %v410, 256
        %v413 = vpop.permute.xlu0 %412
        %v414 = vlaneseq
        %v415 = vshrl.u32 %v414, 7
        %v416 = vsub.s32 6, %v415
        %v417 = vrot.slane %v312, %v416
        %419 = vbcast.lane.b32.xlu0 %v417, 256
        %v420 = vpop.permute.xlu0 %419
        %v421 = vlaneseq
        %v422 = vshrl.u32 %v421, 7
        %v423 = vsub.s32 7, %v422
        %v424 = vrot.slane %v312, %v423
        %426 = vbcast.lane.b32.xlu0 %v424, 256
        %v427 = vpop.permute.xlu0 %426
        %vm428 = vcmp.eq.s32.totalorder %v322, %v314
        %vm429 = vcmp.eq.s32.totalorder %v322, %v315
        %vm430 = vcmp.eq.s32.totalorder %v329, %v314
        %vm431 = vcmp.eq.s32.totalorder %v329, %v315
        %vm432 = vcmp.eq.s32.totalorder %v336, %v314
        %vm433 = vcmp.eq.s32.totalorder %v336, %v315
        %vm434 = vcmp.eq.s32.totalorder %v343, %v314
        %vm435 = vcmp.eq.s32.totalorder %v343, %v315
        %vm436 = vcmp.eq.s32.totalorder %v350, %v314
        %vm437 = vcmp.eq.s32.totalorder %v350, %v315
        %vm438 = vcmp.eq.s32.totalorder %v357, %v314
        %vm439 = vcmp.eq.s32.totalorder %v357, %v315
        %vm440 = vcmp.eq.s32.totalorder %v364, %v314
        %vm441 = vcmp.eq.s32.totalorder %v364, %v315
        %vm442 = vcmp.eq.s32.totalorder %v371, %v314
        %vm443 = vcmp.eq.s32.totalorder %v371, %v315
        %vm444 = vcmp.eq.s32.totalorder %v378, %v314
        %vm445 = vcmp.eq.s32.totalorder %v378, %v315
        %vm446 = vcmp.eq.s32.totalorder %v385, %v314
        %vm447 = vcmp.eq.s32.totalorder %v385, %v315
        %vm448 = vcmp.eq.s32.totalorder %v392, %v314
        %vm449 = vcmp.eq.s32.totalorder %v392, %v315
        %vm450 = vcmp.eq.s32.totalorder %v399, %v314
        %vm451 = vcmp.eq.s32.totalorder %v399, %v315
        %vm452 = vcmp.eq.s32.totalorder %v406, %v314
        %vm453 = vcmp.eq.s32.totalorder %v406, %v315
        %vm454 = vcmp.eq.s32.totalorder %v413, %v314
        %vm455 = vcmp.eq.s32.totalorder %v413, %v315
        %vm456 = vcmp.eq.s32.totalorder %v420, %v314
        %vm457 = vcmp.eq.s32.totalorder %v420, %v315
        %vm458 = vcmp.eq.s32.totalorder %v427, %v314
        %vm459 = vcmp.eq.s32.totalorder %v427, %v315
        %s461 = sor.u32 256, 1
        %462 = vbcast.lane.b32.xlu0 %v319, %s461
        %v463 = vpop.permute.xlu0 %462
        %s465 = sor.u32 256, 1
        %466 = vbcast.lane.b32.xlu0 %v326, %s465
        %v467 = vpop.permute.xlu0 %466
        %s469 = sor.u32 256, 1
        %470 = vbcast.lane.b32.xlu0 %v333, %s469
        %v471 = vpop.permute.xlu0 %470
        %s473 = sor.u32 256, 1
        %474 = vbcast.lane.b32.xlu0 %v340, %s473
        %v475 = vpop.permute.xlu0 %474
        %s477 = sor.u32 256, 1
        %478 = vbcast.lane.b32.xlu0 %v347, %s477
        %v479 = vpop.permute.xlu0 %478
        %s481 = sor.u32 256, 1
        %482 = vbcast.lane.b32.xlu0 %v354, %s481
        %v483 = vpop.permute.xlu0 %482
        %s485 = sor.u32 256, 1
        %486 = vbcast.lane.b32.xlu0 %v361, %s485
        %v487 = vpop.permute.xlu0 %486
        %s489 = sor.u32 256, 1
        %490 = vbcast.lane.b32.xlu0 %v368, %s489
        %v491 = vpop.permute.xlu0 %490
        %s493 = sor.u32 256, 1
        %494 = vbcast.lane.b32.xlu0 %v375, %s493
        %v495 = vpop.permute.xlu0 %494
        %s497 = sor.u32 256, 1
        %498 = vbcast.lane.b32.xlu0 %v382, %s497
        %v499 = vpop.permute.xlu0 %498
        %s501 = sor.u32 256, 1
        %502 = vbcast.lane.b32.xlu0 %v389, %s501
        %v503 = vpop.permute.xlu0 %502
        %s505 = sor.u32 256, 1
        %506 = vbcast.lane.b32.xlu0 %v396, %s505
        %v507 = vpop.permute.xlu0 %506
        %s509 = sor.u32 256, 1
        %510 = vbcast.lane.b32.xlu0 %v403, %s509
        %v511 = vpop.permute.xlu0 %510
        %s513 = sor.u32 256, 1
        %514 = vbcast.lane.b32.xlu0 %v410, %s513
        %v515 = vpop.permute.xlu0 %514
        %s517 = sor.u32 256, 1
        %518 = vbcast.lane.b32.xlu0 %v417, %s517
        %v519 = vpop.permute.xlu0 %518
        %s521 = sor.u32 256, 1
        %522 = vbcast.lane.b32.xlu0 %v424, %s521
        %v523 = vpop.permute.xlu0 %522
        %v524 = vadd.s32 %v463, 30
        %v525 = vadd.s32 %v467, 30
        %v526 = vadd.s32 %v471, 30
        %v527 = vadd.s32 %v475, 30
        %v528 = vadd.s32 %v479, 30
        %v529 = vadd.s32 %v483, 30
        %v530 = vadd.s32 %v487, 30
        %v531 = vadd.s32 %v491, 30
        %v532 = vadd.s32 %v495, 30
        %v533 = vadd.s32 %v499, 30
        %v534 = vadd.s32 %v503, 30
        %v535 = vadd.s32 %v507, 30
        %v536 = vadd.s32 %v511, 30
        %v537 = vadd.s32 %v515, 30
        %v538 = vadd.s32 %v519, 30
        %v539 = vadd.s32 %v523, 30
        %vm540 = vcmp.eq.s32.totalorder %v524, %v314
        %vm541 = vcmp.eq.s32.totalorder %v524, %v315
        %vm542 = vcmp.eq.s32.totalorder %v525, %v314
        %vm543 = vcmp.eq.s32.totalorder %v525, %v315
        %vm544 = vcmp.eq.s32.totalorder %v526, %v314
        %vm545 = vcmp.eq.s32.totalorder %v526, %v315
        %vm546 = vcmp.eq.s32.totalorder %v527, %v314
        %vm547 = vcmp.eq.s32.totalorder %v527, %v315
        %vm548 = vcmp.eq.s32.totalorder %v528, %v314
        %vm549 = vcmp.eq.s32.totalorder %v528, %v315
        %vm550 = vcmp.eq.s32.totalorder %v529, %v314
        %vm551 = vcmp.eq.s32.totalorder %v529, %v315
        %vm552 = vcmp.eq.s32.totalorder %v530, %v314
        %vm553 = vcmp.eq.s32.totalorder %v530, %v315
        %vm554 = vcmp.eq.s32.totalorder %v531, %v314
        %vm555 = vcmp.eq.s32.totalorder %v531, %v315
        %vm556 = vcmp.eq.s32.totalorder %v532, %v314
        %vm557 = vcmp.eq.s32.totalorder %v532, %v315
        %vm558 = vcmp.eq.s32.totalorder %v533, %v314
        %vm559 = vcmp.eq.s32.totalorder %v533, %v315
        %vm560 = vcmp.eq.s32.totalorder %v534, %v314
        %vm561 = vcmp.eq.s32.totalorder %v534, %v315
        %vm562 = vcmp.eq.s32.totalorder %v535, %v314
        %vm563 = vcmp.eq.s32.totalorder %v535, %v315
        %vm564 = vcmp.eq.s32.totalorder %v536, %v314
        %vm565 = vcmp.eq.s32.totalorder %v536, %v315
        %vm566 = vcmp.eq.s32.totalorder %v537, %v314
        %vm567 = vcmp.eq.s32.totalorder %v537, %v315
        %vm568 = vcmp.eq.s32.totalorder %v538, %v314
        %vm569 = vcmp.eq.s32.totalorder %v538, %v315
        %vm570 = vcmp.eq.s32.totalorder %v539, %v314
        %vm571 = vcmp.eq.s32.totalorder %v539, %v315
        %vm572 = vmor %vm428, %vm540
        %vm573 = vmor %vm429, %vm541
        %vm574 = vmor %vm430, %vm542
        %vm575 = vmor %vm431, %vm543
        %vm576 = vmor %vm432, %vm544
        %vm577 = vmor %vm433, %vm545
        %vm578 = vmor %vm434, %vm546
        %vm579 = vmor %vm435, %vm547
        %vm580 = vmor %vm436, %vm548
        %vm581 = vmor %vm437, %vm549
        %vm582 = vmor %vm438, %vm550
        %vm583 = vmor %vm439, %vm551
        %vm584 = vmor %vm440, %vm552
        %vm585 = vmor %vm441, %vm553
        %vm586 = vmor %vm442, %vm554
        %vm587 = vmor %vm443, %vm555
        %vm588 = vmor %vm444, %vm556
        %vm589 = vmor %vm445, %vm557
        %vm590 = vmor %vm446, %vm558
        %vm591 = vmor %vm447, %vm559
        %vm592 = vmor %vm448, %vm560
        %vm593 = vmor %vm449, %vm561
        %vm594 = vmor %vm450, %vm562
        %vm595 = vmor %vm451, %vm563
        %vm596 = vmor %vm452, %vm564
        %vm597 = vmor %vm453, %vm565
        %vm598 = vmor %vm454, %vm566
        %vm599 = vmor %vm455, %vm567
        %vm600 = vmor %vm456, %vm568
        %vm601 = vmor %vm457, %vm569
        %vm602 = vmor %vm458, %vm570
        %vm603 = vmor %vm459, %vm571
        %s605 = sor.u32 256, 2
        %606 = vbcast.lane.b32.xlu0 %v319, %s605
        %v607 = vpop.permute.xlu0 %606
        %s609 = sor.u32 256, 2
        %610 = vbcast.lane.b32.xlu0 %v326, %s609
        %v611 = vpop.permute.xlu0 %610
        %s613 = sor.u32 256, 2
        %614 = vbcast.lane.b32.xlu0 %v333, %s613
        %v615 = vpop.permute.xlu0 %614
        %s617 = sor.u32 256, 2
        %618 = vbcast.lane.b32.xlu0 %v340, %s617
        %v619 = vpop.permute.xlu0 %618
        %s621 = sor.u32 256, 2
        %622 = vbcast.lane.b32.xlu0 %v347, %s621
        %v623 = vpop.permute.xlu0 %622
        %s625 = sor.u32 256, 2
        %626 = vbcast.lane.b32.xlu0 %v354, %s625
        %v627 = vpop.permute.xlu0 %626
        %s629 = sor.u32 256, 2
        %630 = vbcast.lane.b32.xlu0 %v361, %s629
        %v631 = vpop.permute.xlu0 %630
        %s633 = sor.u32 256, 2
        %634 = vbcast.lane.b32.xlu0 %v368, %s633
        %v635 = vpop.permute.xlu0 %634
        %s637 = sor.u32 256, 2
        %638 = vbcast.lane.b32.xlu0 %v375, %s637
        %v639 = vpop.permute.xlu0 %638
        %s641 = sor.u32 256, 2
        %642 = vbcast.lane.b32.xlu0 %v382, %s641
        %v643 = vpop.permute.xlu0 %642
        %s645 = sor.u32 256, 2
        %646 = vbcast.lane.b32.xlu0 %v389, %s645
        %v647 = vpop.permute.xlu0 %646
        %s649 = sor.u32 256, 2
        %650 = vbcast.lane.b32.xlu0 %v396, %s649
        %v651 = vpop.permute.xlu0 %650
        %s653 = sor.u32 256, 2
        %654 = vbcast.lane.b32.xlu0 %v403, %s653
        %v655 = vpop.permute.xlu0 %654
        %s657 = sor.u32 256, 2
        %658 = vbcast.lane.b32.xlu0 %v410, %s657
        %v659 = vpop.permute.xlu0 %658
        %s661 = sor.u32 256, 2
        %662 = vbcast.lane.b32.xlu0 %v417, %s661
        %v663 = vpop.permute.xlu0 %662
        %s665 = sor.u32 256, 2
        %666 = vbcast.lane.b32.xlu0 %v424, %s665
        %v667 = vpop.permute.xlu0 %666
        %v668 = vadd.s32 %v607, 60
        %v669 = vadd.s32 %v611, 60
        %v670 = vadd.s32 %v615, 60
        %v671 = vadd.s32 %v619, 60
        %v672 = vadd.s32 %v623, 60
        %v673 = vadd.s32 %v627, 60
        %v674 = vadd.s32 %v631, 60
        %v675 = vadd.s32 %v635, 60
        %v676 = vadd.s32 %v639, 60
        %v677 = vadd.s32 %v643, 60
        %v678 = vadd.s32 %v647, 60
        %v679 = vadd.s32 %v651, 60
        %v680 = vadd.s32 %v655, 60
        %v681 = vadd.s32 %v659, 60
        %v682 = vadd.s32 %v663, 60
        %v683 = vadd.s32 %v667, 60
        %vm684 = vcmp.eq.s32.totalorder %v668, %v314
        %vm685 = vcmp.eq.s32.totalorder %v668, %v315
        %vm686 = vcmp.eq.s32.totalorder %v669, %v314
        %vm687 = vcmp.eq.s32.totalorder %v669, %v315
        %vm688 = vcmp.eq.s32.totalorder %v670, %v314
        %vm689 = vcmp.eq.s32.totalorder %v670, %v315
        %vm690 = vcmp.eq.s32.totalorder %v671, %v314
        %vm691 = vcmp.eq.s32.totalorder %v671, %v315
        %vm692 = vcmp.eq.s32.totalorder %v672, %v314
        %vm693 = vcmp.eq.s32.totalorder %v672, %v315
        %vm694 = vcmp.eq.s32.totalorder %v673, %v314
        %vm695 = vcmp.eq.s32.totalorder %v673, %v315
        %vm696 = vcmp.eq.s32.totalorder %v674, %v314
        %vm697 = vcmp.eq.s32.totalorder %v674, %v315
        %vm698 = vcmp.eq.s32.totalorder %v675, %v314
        %vm699 = vcmp.eq.s32.totalorder %v675, %v315
        %vm700 = vcmp.eq.s32.totalorder %v676, %v314
        %vm701 = vcmp.eq.s32.totalorder %v676, %v315
        %vm702 = vcmp.eq.s32.totalorder %v677, %v314
        %vm703 = vcmp.eq.s32.totalorder %v677, %v315
        %vm704 = vcmp.eq.s32.totalorder %v678, %v314
        %vm705 = vcmp.eq.s32.totalorder %v678, %v315
        %vm706 = vcmp.eq.s32.totalorder %v679, %v314
        %vm707 = vcmp.eq.s32.totalorder %v679, %v315
        %vm708 = vcmp.eq.s32.totalorder %v680, %v314
        %vm709 = vcmp.eq.s32.totalorder %v680, %v315
        %vm710 = vcmp.eq.s32.totalorder %v681, %v314
        %vm711 = vcmp.eq.s32.totalorder %v681, %v315
        %vm712 = vcmp.eq.s32.totalorder %v682, %v314
        %vm713 = vcmp.eq.s32.totalorder %v682, %v315
        %vm714 = vcmp.eq.s32.totalorder %v683, %v314
        %vm715 = vcmp.eq.s32.totalorder %v683, %v315
        %vm716 = vmor %vm572, %vm684
        %vm717 = vmor %vm573, %vm685
        %vm718 = vmor %vm574, %vm686
        %vm719 = vmor %vm575, %vm687
        %vm720 = vmor %vm576, %vm688
        %vm721 = vmor %vm577, %vm689
        %vm722 = vmor %vm578, %vm690
        %vm723 = vmor %vm579, %vm691
        %vm724 = vmor %vm580, %vm692
        %vm725 = vmor %vm581, %vm693
        %vm726 = vmor %vm582, %vm694
        %vm727 = vmor %vm583, %vm695
        %vm728 = vmor %vm584, %vm696
        %vm729 = vmor %vm585, %vm697
        %vm730 = vmor %vm586, %vm698
        %vm731 = vmor %vm587, %vm699
        %vm732 = vmor %vm588, %vm700
        %vm733 = vmor %vm589, %vm701
        %vm734 = vmor %vm590, %vm702
        %vm735 = vmor %vm591, %vm703
        %vm736 = vmor %vm592, %vm704
        %vm737 = vmor %vm593, %vm705
        %vm738 = vmor %vm594, %vm706
        %vm739 = vmor %vm595, %vm707
        %vm740 = vmor %vm596, %vm708
        %vm741 = vmor %vm597, %vm709
        %vm742 = vmor %vm598, %vm710
        %vm743 = vmor %vm599, %vm711
        %vm744 = vmor %vm600, %vm712
        %vm745 = vmor %vm601, %vm713
        %vm746 = vmor %vm602, %vm714
        %vm747 = vmor %vm603, %vm715
        %s749 = sor.u32 256, 3
        %750 = vbcast.lane.b32.xlu0 %v319, %s749
        %v751 = vpop.permute.xlu0 %750
        %s753 = sor.u32 256, 3
        %754 = vbcast.lane.b32.xlu0 %v326, %s753
        %v755 = vpop.permute.xlu0 %754
        %s757 = sor.u32 256, 3
        %758 = vbcast.lane.b32.xlu0 %v333, %s757
        %v759 = vpop.permute.xlu0 %758
        %s761 = sor.u32 256, 3
        %762 = vbcast.lane.b32.xlu0 %v340, %s761
        %v763 = vpop.permute.xlu0 %762
        %s765 = sor.u32 256, 3
        %766 = vbcast.lane.b32.xlu0 %v347, %s765
        %v767 = vpop.permute.xlu0 %766
        %s769 = sor.u32 256, 3
        %770 = vbcast.lane.b32.xlu0 %v354, %s769
        %v771 = vpop.permute.xlu0 %770
        %s773 = sor.u32 256, 3
        %774 = vbcast.lane.b32.xlu0 %v361, %s773
        %v775 = vpop.permute.xlu0 %774
        %s777 = sor.u32 256, 3
        %778 = vbcast.lane.b32.xlu0 %v368, %s777
        %v779 = vpop.permute.xlu0 %778
        %s781 = sor.u32 256, 3
        %782 = vbcast.lane.b32.xlu0 %v375, %s781
        %v783 = vpop.permute.xlu0 %782
        %s785 = sor.u32 256, 3
        %786 = vbcast.lane.b32.xlu0 %v382, %s785
        %v787 = vpop.permute.xlu0 %786
        %s789 = sor.u32 256, 3
        %790 = vbcast.lane.b32.xlu0 %v389, %s789
        %v791 = vpop.permute.xlu0 %790
        %s793 = sor.u32 256, 3
        %794 = vbcast.lane.b32.xlu0 %v396, %s793
        %v795 = vpop.permute.xlu0 %794
        %s797 = sor.u32 256, 3
        %798 = vbcast.lane.b32.xlu0 %v403, %s797
        %v799 = vpop.permute.xlu0 %798
        %s801 = sor.u32 256, 3
        %802 = vbcast.lane.b32.xlu0 %v410, %s801
        %v803 = vpop.permute.xlu0 %802
        %s805 = sor.u32 256, 3
        %806 = vbcast.lane.b32.xlu0 %v417, %s805
        %v807 = vpop.permute.xlu0 %806
        %s809 = sor.u32 256, 3
        %810 = vbcast.lane.b32.xlu0 %v424, %s809
        %v811 = vpop.permute.xlu0 %810
        %v812 = vadd.s32 %v751, 90
        %v813 = vadd.s32 %v755, 90
        %v814 = vadd.s32 %v759, 90
        %v815 = vadd.s32 %v763, 90
        %v816 = vadd.s32 %v767, 90
        %v817 = vadd.s32 %v771, 90
        %v818 = vadd.s32 %v775, 90
        %v819 = vadd.s32 %v779, 90
        %v820 = vadd.s32 %v783, 90
        %v821 = vadd.s32 %v787, 90
        %v822 = vadd.s32 %v791, 90
        %v823 = vadd.s32 %v795, 90
        %v824 = vadd.s32 %v799, 90
        %v825 = vadd.s32 %v803, 90
        %v826 = vadd.s32 %v807, 90
        %v827 = vadd.s32 %v811, 90
        %vm828 = vcmp.eq.s32.totalorder %v812, %v314
        %vm829 = vcmp.eq.s32.totalorder %v812, %v315
        %vm830 = vcmp.eq.s32.totalorder %v813, %v314
        %vm831 = vcmp.eq.s32.totalorder %v813, %v315
        %vm832 = vcmp.eq.s32.totalorder %v814, %v314
        %vm833 = vcmp.eq.s32.totalorder %v814, %v315
        %vm834 = vcmp.eq.s32.totalorder %v815, %v314
        %vm835 = vcmp.eq.s32.totalorder %v815, %v315
        %vm836 = vcmp.eq.s32.totalorder %v816, %v314
        %vm837 = vcmp.eq.s32.totalorder %v816, %v315
        %vm838 = vcmp.eq.s32.totalorder %v817, %v314
        %vm839 = vcmp.eq.s32.totalorder %v817, %v315
        %vm840 = vcmp.eq.s32.totalorder %v818, %v314
        %vm841 = vcmp.eq.s32.totalorder %v818, %v315
        %vm842 = vcmp.eq.s32.totalorder %v819, %v314
        %vm843 = vcmp.eq.s32.totalorder %v819, %v315
        %vm844 = vcmp.eq.s32.totalorder %v820, %v314
        %vm845 = vcmp.eq.s32.totalorder %v820, %v315
        %vm846 = vcmp.eq.s32.totalorder %v821, %v314
        %vm847 = vcmp.eq.s32.totalorder %v821, %v315
        %vm848 = vcmp.eq.s32.totalorder %v822, %v314
        %vm849 = vcmp.eq.s32.totalorder %v822, %v315
        %vm850 = vcmp.eq.s32.totalorder %v823, %v314
        %vm851 = vcmp.eq.s32.totalorder %v823, %v315
        %vm852 = vcmp.eq.s32.totalorder %v824, %v314
        %vm853 = vcmp.eq.s32.totalorder %v824, %v315
        %vm854 = vcmp.eq.s32.totalorder %v825, %v314
        %vm855 = vcmp.eq.s32.totalorder %v825, %v315
        %vm856 = vcmp.eq.s32.totalorder %v826, %v314
        %vm857 = vcmp.eq.s32.totalorder %v826, %v315
        %vm858 = vcmp.eq.s32.totalorder %v827, %v314
        %vm859 = vcmp.eq.s32.totalorder %v827, %v315
        %vm860 = vmor %vm716, %vm828
        %vm861 = vmor %vm717, %vm829
        %vm862 = vmor %vm718, %vm830
        %vm863 = vmor %vm719, %vm831
        %vm864 = vmor %vm720, %vm832
        %vm865 = vmor %vm721, %vm833
        %vm866 = vmor %vm722, %vm834
        %vm867 = vmor %vm723, %vm835
        %vm868 = vmor %vm724, %vm836
        %vm869 = vmor %vm725, %vm837
        %vm870 = vmor %vm726, %vm838
        %vm871 = vmor %vm727, %vm839
        %vm872 = vmor %vm728, %vm840
        %vm873 = vmor %vm729, %vm841
        %vm874 = vmor %vm730, %vm842
        %vm875 = vmor %vm731, %vm843
        %vm876 = vmor %vm732, %vm844
        %vm877 = vmor %vm733, %vm845
        %vm878 = vmor %vm734, %vm846
        %vm879 = vmor %vm735, %vm847
        %vm880 = vmor %vm736, %vm848
        %vm881 = vmor %vm737, %vm849
        %vm882 = vmor %vm738, %vm850
        %vm883 = vmor %vm739, %vm851
        %vm884 = vmor %vm740, %vm852
        %vm885 = vmor %vm741, %vm853
        %vm886 = vmor %vm742, %vm854
        %vm887 = vmor %vm743, %vm855
        %vm888 = vmor %vm744, %vm856
        %vm889 = vmor %vm745, %vm857
        %vm890 = vmor %vm746, %vm858
        %vm891 = vmor %vm747, %vm859
        %s893 = sor.u32 256, 4
        %894 = vbcast.lane.b32.xlu0 %v319, %s893
        %v895 = vpop.permute.xlu0 %894
        %s897 = sor.u32 256, 4
        %898 = vbcast.lane.b32.xlu0 %v326, %s897
        %v899 = vpop.permute.xlu0 %898
        %s901 = sor.u32 256, 4
        %902 = vbcast.lane.b32.xlu0 %v333, %s901
        %v903 = vpop.permute.xlu0 %902
        %s905 = sor.u32 256, 4
        %906 = vbcast.lane.b32.xlu0 %v340, %s905
        %v907 = vpop.permute.xlu0 %906
        %s909 = sor.u32 256, 4
        %910 = vbcast.lane.b32.xlu0 %v347, %s909
        %v911 = vpop.permute.xlu0 %910
        %s913 = sor.u32 256, 4
        %914 = vbcast.lane.b32.xlu0 %v354, %s913
        %v915 = vpop.permute.xlu0 %914
        %s917 = sor.u32 256, 4
        %918 = vbcast.lane.b32.xlu0 %v361, %s917
        %v919 = vpop.permute.xlu0 %918
        %s921 = sor.u32 256, 4
        %922 = vbcast.lane.b32.xlu0 %v368, %s921
        %v923 = vpop.permute.xlu0 %922
        %s925 = sor.u32 256, 4
        %926 = vbcast.lane.b32.xlu0 %v375, %s925
        %v927 = vpop.permute.xlu0 %926
        %s929 = sor.u32 256, 4
        %930 = vbcast.lane.b32.xlu0 %v382, %s929
        %v931 = vpop.permute.xlu0 %930
        %s933 = sor.u32 256, 4
        %934 = vbcast.lane.b32.xlu0 %v389, %s933
        %v935 = vpop.permute.xlu0 %934
        %s937 = sor.u32 256, 4
        %938 = vbcast.lane.b32.xlu0 %v396, %s937
        %v939 = vpop.permute.xlu0 %938
        %s941 = sor.u32 256, 4
        %942 = vbcast.lane.b32.xlu0 %v403, %s941
        %v943 = vpop.permute.xlu0 %942
        %s945 = sor.u32 256, 4
        %946 = vbcast.lane.b32.xlu0 %v410, %s945
        %v947 = vpop.permute.xlu0 %946
        %s949 = sor.u32 256, 4
        %950 = vbcast.lane.b32.xlu0 %v417, %s949
        %v951 = vpop.permute.xlu0 %950
        %s953 = sor.u32 256, 4
        %954 = vbcast.lane.b32.xlu0 %v424, %s953
        %v955 = vpop.permute.xlu0 %954
        %v956 = vadd.s32 %v895, 120
        %v957 = vadd.s32 %v899, 120
        %v958 = vadd.s32 %v903, 120
        %v959 = vadd.s32 %v907, 120
        %v960 = vadd.s32 %v911, 120
        %v961 = vadd.s32 %v915, 120
        %v962 = vadd.s32 %v919, 120
        %v963 = vadd.s32 %v923, 120
        %v964 = vadd.s32 %v927, 120
        %v965 = vadd.s32 %v931, 120
        %v966 = vadd.s32 %v935, 120
        %v967 = vadd.s32 %v939, 120
        %v968 = vadd.s32 %v943, 120
        %v969 = vadd.s32 %v947, 120
        %v970 = vadd.s32 %v951, 120
        %v971 = vadd.s32 %v955, 120
        %vm972 = vcmp.eq.s32.totalorder %v956, %v314
        %vm973 = vcmp.eq.s32.totalorder %v956, %v315
        %vm974 = vcmp.eq.s32.totalorder %v957, %v314
        %vm975 = vcmp.eq.s32.totalorder %v957, %v315
        %vm976 = vcmp.eq.s32.totalorder %v958, %v314
        %vm977 = vcmp.eq.s32.totalorder %v958, %v315
        %vm978 = vcmp.eq.s32.totalorder %v959, %v314
        %vm979 = vcmp.eq.s32.totalorder %v959, %v315
        %vm980 = vcmp.eq.s32.totalorder %v960, %v314
        %vm981 = vcmp.eq.s32.totalorder %v960, %v315
        %vm982 = vcmp.eq.s32.totalorder %v961, %v314
        %vm983 = vcmp.eq.s32.totalorder %v961, %v315
        %vm984 = vcmp.eq.s32.totalorder %v962, %v314
        %vm985 = vcmp.eq.s32.totalorder %v962, %v315
        %vm986 = vcmp.eq.s32.totalorder %v963, %v314
        %vm987 = vcmp.eq.s32.totalorder %v963, %v315
        %vm988 = vcmp.eq.s32.totalorder %v964, %v314
        %vm989 = vcmp.eq.s32.totalorder %v964, %v315
        %vm990 = vcmp.eq.s32.totalorder %v965, %v314
        %vm991 = vcmp.eq.s32.totalorder %v965, %v315
        %vm992 = vcmp.eq.s32.totalorder %v966, %v314
        %vm993 = vcmp.eq.s32.totalorder %v966, %v315
        %vm994 = vcmp.eq.s32.totalorder %v967, %v314
        %vm995 = vcmp.eq.s32.totalorder %v967, %v315
        %vm996 = vcmp.eq.s32.totalorder %v968, %v314
        %vm997 = vcmp.eq.s32.totalorder %v968, %v315
        %vm998 = vcmp.eq.s32.totalorder %v969, %v314
        %vm999 = vcmp.eq.s32.totalorder %v969, %v315
        %vm1000 = vcmp.eq.s32.totalorder %v970, %v314
        %vm1001 = vcmp.eq.s32.totalorder %v970, %v315
        %vm1002 = vcmp.eq.s32.totalorder %v971, %v314
        %vm1003 = vcmp.eq.s32.totalorder %v971, %v315
        %vm1004 = vmor %vm860, %vm972
        %vm1005 = vmor %vm861, %vm973
        %vm1006 = vmor %vm862, %vm974
        %vm1007 = vmor %vm863, %vm975
        %vm1008 = vmor %vm864, %vm976
        %vm1009 = vmor %vm865, %vm977
        %vm1010 = vmor %vm866, %vm978
        %vm1011 = vmor %vm867, %vm979
        %vm1012 = vmor %vm868, %vm980
        %vm1013 = vmor %vm869, %vm981
        %vm1014 = vmor %vm870, %vm982
        %vm1015 = vmor %vm871, %vm983
        %vm1016 = vmor %vm872, %vm984
        %vm1017 = vmor %vm873, %vm985
        %vm1018 = vmor %vm874, %vm986
        %vm1019 = vmor %vm875, %vm987
        %vm1020 = vmor %vm876, %vm988
        %vm1021 = vmor %vm877, %vm989
        %vm1022 = vmor %vm878, %vm990
        %vm1023 = vmor %vm879, %vm991
        %vm1024 = vmor %vm880, %vm992
        %vm1025 = vmor %vm881, %vm993
        %vm1026 = vmor %vm882, %vm994
        %vm1027 = vmor %vm883, %vm995
        %vm1028 = vmor %vm884, %vm996
        %vm1029 = vmor %vm885, %vm997
        %vm1030 = vmor %vm886, %vm998
        %vm1031 = vmor %vm887, %vm999
        %vm1032 = vmor %vm888, %vm1000
        %vm1033 = vmor %vm889, %vm1001
        %vm1034 = vmor %vm890, %vm1002
        %vm1035 = vmor %vm891, %vm1003
        %v1036 = vsel %vm1004, 1, 0
        %v1037 = vsel %vm1005, 1, 0
        %v1038 = vsel %vm1006, 1, 0
        %v1039 = vsel %vm1007, 1, 0
        %v1040 = vsel %vm1008, 1, 0
        %v1041 = vsel %vm1009, 1, 0
        %v1042 = vsel %vm1010, 1, 0
        %v1043 = vsel %vm1011, 1, 0
        %v1044 = vsel %vm1012, 1, 0
        %v1045 = vsel %vm1013, 1, 0
        %v1046 = vsel %vm1014, 1, 0
        %v1047 = vsel %vm1015, 1, 0
        %v1048 = vsel %vm1016, 1, 0
        %v1049 = vsel %vm1017, 1, 0
        %v1050 = vsel %vm1018, 1, 0
        %v1051 = vsel %vm1019, 1, 0
        %v1052 = vsel %vm1020, 1, 0
        %v1053 = vsel %vm1021, 1, 0
        %v1054 = vsel %vm1022, 1, 0
        %v1055 = vsel %vm1023, 1, 0
        %v1056 = vsel %vm1024, 1, 0
        %v1057 = vsel %vm1025, 1, 0
        %v1058 = vsel %vm1026, 1, 0
        %v1059 = vsel %vm1027, 1, 0
        %v1060 = vsel %vm1028, 1, 0
        %v1061 = vsel %vm1029, 1, 0
        %v1062 = vsel %vm1030, 1, 0
        %v1063 = vsel %vm1031, 1, 0
        %v1064 = vsel %vm1032, 1, 0
        %v1065 = vsel %vm1033, 1, 0
        %v1066 = vsel %vm1034, 1, 0
        %v1067 = vsel %vm1035, 1, 0
        %v1068 = vcvt.s32.f32 %v1036
        %v1069 = vcvt.s32.f32 %v1037
        %v1070 = vcvt.s32.f32 %v1038
        %v1071 = vcvt.s32.f32 %v1039
        %v1072 = vcvt.s32.f32 %v1040
        %v1073 = vcvt.s32.f32 %v1041
        %v1074 = vcvt.s32.f32 %v1042
        %v1075 = vcvt.s32.f32 %v1043
        %v1076 = vcvt.s32.f32 %v1044
        %v1077 = vcvt.s32.f32 %v1045
        %v1078 = vcvt.s32.f32 %v1046
        %v1079 = vcvt.s32.f32 %v1047
        %v1080 = vcvt.s32.f32 %v1048
        %v1081 = vcvt.s32.f32 %v1049
        %v1082 = vcvt.s32.f32 %v1050
        %v1083 = vcvt.s32.f32 %v1051
        %v1084 = vcvt.s32.f32 %v1052
        %v1085 = vcvt.s32.f32 %v1053
        %v1086 = vcvt.s32.f32 %v1054
        %v1087 = vcvt.s32.f32 %v1055
        %v1088 = vcvt.s32.f32 %v1056
        %v1089 = vcvt.s32.f32 %v1057
        %v1090 = vcvt.s32.f32 %v1058
        %v1091 = vcvt.s32.f32 %v1059
        %v1092 = vcvt.s32.f32 %v1060
        %v1093 = vcvt.s32.f32 %v1061
        %v1094 = vcvt.s32.f32 %v1062
        %v1095 = vcvt.s32.f32 %v1063
        %v1096 = vcvt.s32.f32 %v1064
        %v1097 = vcvt.s32.f32 %v1065
        %v1098 = vcvt.s32.f32 %v1066
        %v1099 = vcvt.s32.f32 %v1067
        %v1100 = vpack.c.bf16 %v1068, %v1068
        %v1101 = vpack.c.bf16 %v1069, %v1069
        %v1102 = vpack.c.bf16 %v1070, %v1070
        %v1103 = vpack.c.bf16 %v1071, %v1071
        %v1104 = vpack.c.bf16 %v1072, %v1072
        %v1105 = vpack.c.bf16 %v1073, %v1073
        %v1106 = vpack.c.bf16 %v1074, %v1074
        %v1107 = vpack.c.bf16 %v1075, %v1075
        %v1108 = vpack.c.bf16 %v1076, %v1076
        %v1109 = vpack.c.bf16 %v1077, %v1077
        %v1110 = vpack.c.bf16 %v1078, %v1078
        %v1111 = vpack.c.bf16 %v1079, %v1079
        %v1112 = vpack.c.bf16 %v1080, %v1080
        %v1113 = vpack.c.bf16 %v1081, %v1081
        %v1114 = vpack.c.bf16 %v1082, %v1082
        %v1115 = vpack.c.bf16 %v1083, %v1083
        %v1116 = vpack.c.bf16 %v1084, %v1084
        %v1117 = vpack.c.bf16 %v1085, %v1085
        %v1118 = vpack.c.bf16 %v1086, %v1086
        %v1119 = vpack.c.bf16 %v1087, %v1087
        %v1120 = vpack.c.bf16 %v1088, %v1088
        %v1121 = vpack.c.bf16 %v1089, %v1089
        %v1122 = vpack.c.bf16 %v1090, %v1090
        %v1123 = vpack.c.bf16 %v1091, %v1091
        %v1124 = vpack.c.bf16 %v1092, %v1092
        %v1125 = vpack.c.bf16 %v1093, %v1093
        %v1126 = vpack.c.bf16 %v1094, %v1094
        %v1127 = vpack.c.bf16 %v1095, %v1095
        %v1128 = vpack.c.bf16 %v1096, %v1096
        %v1129 = vpack.c.bf16 %v1097, %v1097
        %v1130 = vpack.c.bf16 %v1098, %v1098
        %v1131 = vpack.c.bf16 %v1099, %v1099
        %v1164 = vunpack.c.l.b16 %v1100
        %v1165 = vunpack.c.l.b16 %v1101
        %v1166 = vunpack.c.l.b16 %v1102
        %v1167 = vunpack.c.l.b16 %v1103
        %v1168 = vunpack.c.l.b16 %v1104
        %v1169 = vunpack.c.l.b16 %v1105
        %v1170 = vunpack.c.l.b16 %v1106
        %v1171 = vunpack.c.l.b16 %v1107
        %v1172 = vunpack.c.l.b16 %v1108
        %v1173 = vunpack.c.l.b16 %v1109
        %v1174 = vunpack.c.l.b16 %v1110
        %v1175 = vunpack.c.l.b16 %v1111
        %v1176 = vunpack.c.l.b16 %v1112
        %v1177 = vunpack.c.l.b16 %v1113
        %v1178 = vunpack.c.l.b16 %v1114
        %v1179 = vunpack.c.l.b16 %v1115
        %v1180 = vunpack.c.l.b16 %v1116
        %v1181 = vunpack.c.l.b16 %v1117
        %v1182 = vunpack.c.l.b16 %v1118
        %v1183 = vunpack.c.l.b16 %v1119
        %v1184 = vunpack.c.l.b16 %v1120
        %v1185 = vunpack.c.l.b16 %v1121
        %v1186 = vunpack.c.l.b16 %v1122
        %v1187 = vunpack.c.l.b16 %v1123
        %v1188 = vunpack.c.l.b16 %v1124
        %v1189 = vunpack.c.l.b16 %v1125
        %v1190 = vunpack.c.l.b16 %v1126
        %v1191 = vunpack.c.l.b16 %v1127
        %v1192 = vunpack.c.l.b16 %v1128
        %v1193 = vunpack.c.l.b16 %v1129
        %v1194 = vunpack.c.l.b16 %v1130
        %v1195 = vunpack.c.l.b16 %v1131
        %v1196 = vld [vmem:[#allocation2] sm:$0xf]
        %v1197 = vld [vmem:[#allocation2 + $0x4] sm:$0xf]
        %v1198 = vld [vmem:[#allocation2 + $0x8] sm:$0xf]
        %v1199 = vld [vmem:[#allocation2 + $0xc] sm:$0xf]
        %v1200 = vld [vmem:[#allocation2 + $0x10] sm:$0xf]
        %v1201 = vld [vmem:[#allocation2 + $0x14] sm:$0xf]
        %v1202 = vld [vmem:[#allocation2 + $0x18] sm:$0xf]
        %v1203 = vld [vmem:[#allocation2 + $0x1c] sm:$0xf]
        %v1204 = vld [vmem:[#allocation2 + $0x20] sm:$0xf]
        %v1205 = vld [vmem:[#allocation2 + $0x24] sm:$0xf]
        %v1206 = vld [vmem:[#allocation2 + $0x28] sm:$0xf]
        %v1207 = vld [vmem:[#allocation2 + $0x2c] sm:$0xf]
        %v1208 = vld [vmem:[#allocation2 + $0x30] sm:$0xf]
        %v1209 = vld [vmem:[#allocation2 + $0x34] sm:$0xf]
        %v1210 = vld [vmem:[#allocation2 + $0x38] sm:$0xf]
        %v1211 = vld [vmem:[#allocation2 + $0x3c] sm:$0xf]
        %v1212 = vld [vmem:[#allocation2 + $0x40] sm:$0xf]
        %v1213 = vld [vmem:[#allocation2 + $0x44] sm:$0xf]
        %v1214 = vld [vmem:[#allocation2 + $0x48] sm:$0xf]
        %v1215 = vld [vmem:[#allocation2 + $0x4c] sm:$0xf]
        %v1216 = vld [vmem:[#allocation2 + $0x50] sm:$0xf]
        %v1217 = vld [vmem:[#allocation2 + $0x54] sm:$0xf]
        %v1218 = vld [vmem:[#allocation2 + $0x58] sm:$0xf]
        %v1219 = vld [vmem:[#allocation2 + $0x5c] sm:$0xf]
        %v1220 = vld [vmem:[#allocation2 + $0x60] sm:$0xf]
        %v1221 = vld [vmem:[#allocation2 + $0x64] sm:$0xf]
        %v1222 = vld [vmem:[#allocation2 + $0x68] sm:$0xf]
        %v1223 = vld [vmem:[#allocation2 + $0x6c] sm:$0xf]
        %v1224 = vld [vmem:[#allocation2 + $0x70] sm:$0xf]
        %v1225 = vld [vmem:[#allocation2 + $0x74] sm:$0xf]
        %v1226 = vld [vmem:[#allocation2 + $0x78] sm:$0xf]
        %v1227 = vld [vmem:[#allocation2 + $0x7c] sm:$0xf]
        %v1228 = vpack.c.b16 %v1166, %v1164
        %v1229 = vpack.c.b16 %v1167, %v1165
        %v1230 = vpack.c.b16 %v1170, %v1168
        %v1231 = vpack.c.b16 %v1171, %v1169
        %v1232 = vpack.c.b16 %v1174, %v1172
        %v1233 = vpack.c.b16 %v1175, %v1173
        %v1234 = vpack.c.b16 %v1178, %v1176
        %v1235 = vpack.c.b16 %v1179, %v1177
        %v1236 = vpack.c.b16 %v1182, %v1180
        %v1237 = vpack.c.b16 %v1183, %v1181
        %v1238 = vpack.c.b16 %v1186, %v1184
        %v1239 = vpack.c.b16 %v1187, %v1185
        %v1240 = vpack.c.b16 %v1190, %v1188
        %v1241 = vpack.c.b16 %v1191, %v1189
        %v1242 = vpack.c.b16 %v1194, %v1192
        %v1243 = vpack.c.b16 %v1195, %v1193
        %v1292 = vunpack.c.l.b16 %v1196
        %v1293 = vunpack.c.l.b16 %v1197
        %v1294 = vunpack.c.l.b16 %v1198
        %v1295 = vunpack.c.l.b16 %v1199
        %v1296 = vunpack.c.l.b16 %v1200
        %v1297 = vunpack.c.l.b16 %v1201
        %v1298 = vunpack.c.l.b16 %v1202
        %v1299 = vunpack.c.l.b16 %v1203
        %v1300 = vunpack.c.l.b16 %v1204
        %v1301 = vunpack.c.l.b16 %v1205
        %v1302 = vunpack.c.l.b16 %v1206
        %v1303 = vunpack.c.l.b16 %v1207
        %v1304 = vunpack.c.l.b16 %v1208
        %v1305 = vunpack.c.l.b16 %v1209
        %v1306 = vunpack.c.l.b16 %v1210
        %v1307 = vunpack.c.l.b16 %v1211
        %v1308 = vunpack.c.l.b16 %v1212
        %v1309 = vunpack.c.l.b16 %v1213
        %v1310 = vunpack.c.l.b16 %v1214
        %v1311 = vunpack.c.l.b16 %v1215
        %v1312 = vunpack.c.l.b16 %v1216
        %v1313 = vunpack.c.l.b16 %v1217
        %v1314 = vunpack.c.l.b16 %v1218
        %v1315 = vunpack.c.l.b16 %v1219
        %v1316 = vunpack.c.l.b16 %v1220
        %v1317 = vunpack.c.l.b16 %v1221
        %v1318 = vunpack.c.l.b16 %v1222
        %v1319 = vunpack.c.l.b16 %v1223
        %v1320 = vunpack.c.l.b16 %v1224
        %v1321 = vunpack.c.l.b16 %v1225
        %v1322 = vunpack.c.l.b16 %v1226
        %v1323 = vunpack.c.l.b16 %v1227
        %v1324 = vpack.c.b16 %v1293, %v1292
        %v1325 = vpack.c.b16 %v1295, %v1294
        %v1326 = vpack.c.b16 %v1297, %v1296
        %v1327 = vpack.c.b16 %v1299, %v1298
        %v1328 = vpack.c.b16 %v1301, %v1300
        %v1329 = vpack.c.b16 %v1303, %v1302
        %v1330 = vpack.c.b16 %v1305, %v1304
        %v1331 = vpack.c.b16 %v1307, %v1306
        %v1332 = vpack.c.b16 %v1309, %v1308
        %v1333 = vpack.c.b16 %v1311, %v1310
        %v1334 = vpack.c.b16 %v1313, %v1312
        %v1335 = vpack.c.b16 %v1315, %v1314
        %v1336 = vpack.c.b16 %v1317, %v1316
        %v1337 = vpack.c.b16 %v1319, %v1318
        %v1338 = vpack.c.b16 %v1321, %v1320
        %v1339 = vpack.c.b16 %v1323, %v1322
        %1356 = vmatprep.subr.bf16.mxu0 0
        %1357 = vmatpush1.bf16.msra.mxu0 %v1324
        %1358 = vmatprep.subr.bf16.mxu0 0
        %1359 = vmatpush1.bf16.msra.mxu0 %v1325
        %1360 = vmatprep.subr.bf16.mxu0 0
        %1361 = vmatpush1.bf16.msra.mxu0 %v1326
        %1362 = vmatprep.subr.bf16.mxu0 0
        %1363 = vmatpush1.bf16.msra.mxu0 %v1327
        %1364 = vmatprep.subr.bf16.mxu0 0
        %1365 = vmatpush1.bf16.msra.mxu0 %v1328
        %1366 = vmatprep.subr.bf16.mxu0 0
        %1367 = vmatpush1.bf16.msra.mxu0 %v1329
        %1368 = vmatprep.subr.bf16.mxu0 0
        %1369 = vmatpush1.bf16.msra.mxu0 %v1330
        %1370 = vmatprep.subr.bf16.mxu0 0
        %1371 = vmatpush1.bf16.msra.mxu0 %v1331
        %1372 = vmatprep.subr.bf16.mxu0 0
        %1373 = vmatpush1.bf16.msra.mxu0 %v1332
        %1374 = vmatprep.subr.bf16.mxu0 0
        %1375 = vmatpush1.bf16.msra.mxu0 %v1333
        %1376 = vmatprep.subr.bf16.mxu0 0
        %1377 = vmatpush1.bf16.msra.mxu0 %v1334
        %1378 = vmatprep.subr.bf16.mxu0 0
        %1379 = vmatpush1.bf16.msra.mxu0 %v1335
        %1380 = vmatprep.subr.bf16.mxu0 0
        %1381 = vmatpush1.bf16.msra.mxu0 %v1336
        %1382 = vmatprep.subr.bf16.mxu0 0
        %1383 = vmatpush1.bf16.msra.mxu0 %v1337
        %1384 = vmatprep.subr.bf16.mxu0 0
        %1385 = vmatpush1.bf16.msra.mxu0 %v1338
        %1386 = vmatprep.subr.bf16.mxu0 0
        %1387 = vmatpush1.bf16.msra.mxu0 %v1339
        %1388 = vmatprep.mubr.bf16.mxu0 %v1229
        %1389 = vmatmul.mubr.bf16.gmra.mrb[0].mxu0 %v1228
        %v1390 = vpop.f32.mrb[0].mxu0
        %v1391 = vadd.f32 0.0, %v1390
        %v1392 = vpop.f32.mrb[0].mxu0
        %v1393 = vpop.f32.mrb[0].mxu0
        %v1394 = vadd.f32 0.0, %v1393
        %v1395 = vpop.f32.mrb[0].mxu0
        %1396 = vmatprep.mubr.bf16.mxu0 %v1231
        %1397 = vmatmul.mubr.bf16.gmra.mrb[0].mxu0 %v1230
        %v1398 = vpop.f32.mrb[0].mxu0
        %v1399 = vadd.f32 0.0, %v1398
        %v1400 = vpop.f32.mrb[0].mxu0
        %v1401 = vpop.f32.mrb[0].mxu0
        %v1402 = vadd.f32 0.0, %v1401
        %v1403 = vpop.f32.mrb[0].mxu0
        %1404 = vmatprep.mubr.bf16.mxu0 %v1233
        %1405 = vmatmul.mubr.bf16.gmra.mrb[0].mxu0 %v1232
        %v1406 = vpop.f32.mrb[0].mxu0
        %v1407 = vadd.f32 0.0, %v1406
        %v1408 = vpop.f32.mrb[0].mxu0
        %v1409 = vpop.f32.mrb[0].mxu0
        %v1410 = vadd.f32 0.0, %v1409
        %v1411 = vpop.f32.mrb[0].mxu0
        %1412 = vmatprep.mubr.bf16.mxu0 %v1235
        %1413 = vmatmul.mubr.bf16.gmra.mrb[0].mxu0 %v1234
        %v1414 = vpop.f32.mrb[0].mxu0
        %v1415 = vadd.f32 0.0, %v1414
        %v1416 = vpop.f32.mrb[0].mxu0
        %v1417 = vpop.f32.mrb[0].mxu0
        %v1418 = vadd.f32 0.0, %v1417
        %v1419 = vpop.f32.mrb[0].mxu0
        %1420 = vmatprep.mubr.bf16.mxu0 %v1237
        %1421 = vmatmul.mubr.bf16.gmra.mrb[0].mxu0 %v1236
        %v1422 = vpop.f32.mrb[0].mxu0
        %v1423 = vadd.f32 0.0, %v1422
        %v1424 = vpop.f32.mrb[0].mxu0
        %v1425 = vpop.f32.mrb[0].mxu0
        %v1426 = vadd.f32 0.0, %v1425
        %v1427 = vpop.f32.mrb[0].mxu0
        %1428 = vmatprep.mubr.bf16.mxu0 %v1239
        %1429 = vmatmul.mubr.bf16.gmra.mrb[0].mxu0 %v1238
        %v1430 = vpop.f32.mrb[0].mxu0
        %v1431 = vadd.f32 0.0, %v1430
        %v1432 = vpop.f32.mrb[0].mxu0
        %v1433 = vpop.f32.mrb[0].mxu0
        %v1434 = vadd.f32 0.0, %v1433
        %v1435 = vpop.f32.mrb[0].mxu0
        %1436 = vmatprep.mubr.bf16.mxu0 %v1241
        %1437 = vmatmul.mubr.bf16.gmra.mrb[0].mxu0 %v1240
        %v1438 = vpop.f32.mrb[0].mxu0
        %v1439 = vadd.f32 0.0, %v1438
        %v1440 = vpop.f32.mrb[0].mxu0
        %v1441 = vpop.f32.mrb[0].mxu0
        %v1442 = vadd.f32 0.0, %v1441
        %v1443 = vpop.f32.mrb[0].mxu0
        %1444 = vmatprep.mubr.bf16.mxu0 %v1243
        %1445 = vmatmul.mubr.bf16.gmra.mrb[0].mxu0 %v1242
        %v1446 = vpop.f32.mrb[0].mxu0
        %v1447 = vadd.f32 0.0, %v1446
        %v1448 = vpop.f32.mrb[0].mxu0
        %v1449 = vpop.f32.mrb[0].mxu0
        %v1450 = vadd.f32 0.0, %v1449
        %v1451 = vpop.f32.mrb[0].mxu0
        %1452 = vdwg.mxu0
        %v1453 = vrot.slane %v1391, 4
        %v1454 = vmax.f32 %v1391, %v1453
        %v1455 = vrot.slane %v1454, 2
        %v1456 = vmax.f32 %v1454, %v1455
        %v1457 = vrot.slane %v1456, 1
        %v1458 = vmax.f32 %v1456, %v1457
        %v1459 = vrot.slane %v1394, 4
        %v1460 = vmax.f32 %v1394, %v1459
        %v1461 = vrot.slane %v1460, 2
        %v1462 = vmax.f32 %v1460, %v1461
        %v1463 = vrot.slane %v1462, 1
        %v1464 = vmax.f32 %v1462, %v1463
        %v1465 = vrot.slane %v1399, 4
        %v1466 = vmax.f32 %v1399, %v1465
        %v1467 = vrot.slane %v1466, 2
        %v1468 = vmax.f32 %v1466, %v1467
        %v1469 = vrot.slane %v1468, 1
        %v1470 = vmax.f32 %v1468, %v1469
        %v1471 = vrot.slane %v1402, 4
        %v1472 = vmax.f32 %v1402, %v1471
        %v1473 = vrot.slane %v1472, 2
        %v1474 = vmax.f32 %v1472, %v1473
        %v1475 = vrot.slane %v1474, 1
        %v1476 = vmax.f32 %v1474, %v1475
        %v1477 = vrot.slane %v1407, 4
        %v1478 = vmax.f32 %v1407, %v1477
        %v1479 = vrot.slane %v1478, 2
        %v1480 = vmax.f32 %v1478, %v1479
        %v1481 = vrot.slane %v1480, 1
        %v1482 = vmax.f32 %v1480, %v1481
        %v1483 = vrot.slane %v1410, 4
        %v1484 = vmax.f32 %v1410, %v1483
        %v1485 = vrot.slane %v1484, 2
        %v1486 = vmax.f32 %v1484, %v1485
        %v1487 = vrot.slane %v1486, 1
        %v1488 = vmax.f32 %v1486, %v1487
        %v1489 = vrot.slane %v1415, 4
        %v1490 = vmax.f32 %v1415, %v1489
        %v1491 = vrot.slane %v1490, 2
        %v1492 = vmax.f32 %v1490, %v1491
        %v1493 = vrot.slane %v1492, 1
        %v1494 = vmax.f32 %v1492, %v1493
        %v1495 = vrot.slane %v1418, 4
        %v1496 = vmax.f32 %v1418, %v1495
        %v1497 = vrot.slane %v1496, 2
        %v1498 = vmax.f32 %v1496, %v1497
        %v1499 = vrot.slane %v1498, 1
        %v1500 = vmax.f32 %v1498, %v1499
        %v1501 = vrot.slane %v1423, 4
        %v1502 = vmax.f32 %v1423, %v1501
        %v1503 = vrot.slane %v1502, 2
        %v1504 = vmax.f32 %v1502, %v1503
        %v1505 = vrot.slane %v1504, 1
        %v1506 = vmax.f32 %v1504, %v1505
        %v1507 = vrot.slane %v1426, 4
        %v1508 = vmax.f32 %v1426, %v1507
        %v1509 = vrot.slane %v1508, 2
        %v1510 = vmax.f32 %v1508, %v1509
        %v1511 = vrot.slane %v1510, 1
        %v1512 = vmax.f32 %v1510, %v1511
        %v1513 = vrot.slane %v1431, 4
        %v1514 = vmax.f32 %v1431, %v1513
        %v1515 = vrot.slane %v1514, 2
        %v1516 = vmax.f32 %v1514, %v1515
        %v1517 = vrot.slane %v1516, 1
        %v1518 = vmax.f32 %v1516, %v1517
        %v1519 = vrot.slane %v1434, 4
        %v1520 = vmax.f32 %v1434, %v1519
        %v1521 = vrot.slane %v1520, 2
        %v1522 = vmax.f32 %v1520, %v1521
        %v1523 = vrot.slane %v1522, 1
        %v1524 = vmax.f32 %v1522, %v1523
        %v1525 = vrot.slane %v1439, 4
        %v1526 = vmax.f32 %v1439, %v1525
        %v1527 = vrot.slane %v1526, 2
        %v1528 = vmax.f32 %v1526, %v1527
        %v1529 = vrot.slane %v1528, 1
        %v1530 = vmax.f32 %v1528, %v1529
        %v1531 = vrot.slane %v1442, 4
        %v1532 = vmax.f32 %v1442, %v1531
        %v1533 = vrot.slane %v1532, 2
        %v1534 = vmax.f32 %v1532, %v1533
        %v1535 = vrot.slane %v1534, 1
        %v1536 = vmax.f32 %v1534, %v1535
        %v1537 = vrot.slane %v1447, 4
        %v1538 = vmax.f32 %v1447, %v1537
        %v1539 = vrot.slane %v1538, 2
        %v1540 = vmax.f32 %v1538, %v1539
        %v1541 = vrot.slane %v1540, 1
        %v1542 = vmax.f32 %v1540, %v1541
        %v1543 = vrot.slane %v1450, 4
        %v1544 = vmax.f32 %v1450, %v1543
        %v1545 = vrot.slane %v1544, 2
        %v1546 = vmax.f32 %v1544, %v1545
        %v1547 = vrot.slane %v1546, 1
        %v1548 = vmax.f32 %v1546, %v1547
        %v1549 = vld [vmem:[%s2] sm:$0x1]
        %v1551 = vlaneseq
        %v1552 = vshrl.u32 %v1551, 7
        %v1553 = vsub.s32 0, %v1552
        %v1554 = vrot.slane %v1549, %v1553
        %v1556 = vadd.f32 %v1458, %v1554
        %v1557 = vadd.f32 %v1464, %v1554
        %v1558 = vadd.f32 %v1470, %v1554
        %v1559 = vadd.f32 %v1476, %v1554
        %v1560 = vadd.f32 %v1482, %v1554
        %v1561 = vadd.f32 %v1488, %v1554
        %v1562 = vadd.f32 %v1494, %v1554
        %v1563 = vadd.f32 %v1500, %v1554
        %v1564 = vadd.f32 %v1506, %v1554
        %v1565 = vadd.f32 %v1512, %v1554
        %v1566 = vadd.f32 %v1518, %v1554
        %v1567 = vadd.f32 %v1524, %v1554
        %v1568 = vadd.f32 %v1530, %v1554
        %v1569 = vadd.f32 %v1536, %v1554
        %v1570 = vadd.f32 %v1542, %v1554
        %v1571 = vadd.f32 %v1548, %v1554
        %v1572 = vmax.f32 %v1556, 0.0
        %v1573 = vmax.f32 %v1557, 0.0
        %v1574 = vmax.f32 %v1558, 0.0
        %v1575 = vmax.f32 %v1559, 0.0
        %v1576 = vmax.f32 %v1560, 0.0
        %v1577 = vmax.f32 %v1561, 0.0
        %v1578 = vmax.f32 %v1562, 0.0
        %v1579 = vmax.f32 %v1563, 0.0
        %v1580 = vmax.f32 %v1564, 0.0
        %v1581 = vmax.f32 %v1565, 0.0
        %v1582 = vmax.f32 %v1566, 0.0
        %v1583 = vmax.f32 %v1567, 0.0
        %v1584 = vmax.f32 %v1568, 0.0
        %v1585 = vmax.f32 %v1569, 0.0
        %v1586 = vmax.f32 %v1570, 0.0
        %v1587 = vmax.f32 %v1571, 0.0
        %v1588 = vpack.c.bf16 %v1572, %v1572
        %v1589 = vpack.c.bf16 %v1573, %v1573
        %v1590 = vpack.c.bf16 %v1574, %v1574
        %v1591 = vpack.c.bf16 %v1575, %v1575
        %v1592 = vpack.c.bf16 %v1576, %v1576
        %v1593 = vpack.c.bf16 %v1577, %v1577
        %v1594 = vpack.c.bf16 %v1578, %v1578
        %v1595 = vpack.c.bf16 %v1579, %v1579
        %v1596 = vpack.c.bf16 %v1580, %v1580
        %v1597 = vpack.c.bf16 %v1581, %v1581
        %v1598 = vpack.c.bf16 %v1582, %v1582
        %v1599 = vpack.c.bf16 %v1583, %v1583
        %v1600 = vpack.c.bf16 %v1584, %v1584
        %v1601 = vpack.c.bf16 %v1585, %v1585
        %v1602 = vpack.c.bf16 %v1586, %v1586
        %v1603 = vpack.c.bf16 %v1587, %v1587
        %v1604 = vld [vmem:[%s3] sm:$0xf]
        %v1605 = vld [vmem:[%s3 + $0x4] sm:$0xf]
        %v1606 = vld [vmem:[%s3 + $0x8] sm:$0xf]
        %v1607 = vld [vmem:[%s3 + $0xc] sm:$0xf]
        %v1608 = vld [vmem:[%s3 + $0x10] sm:$0xf]
        %v1609 = vld [vmem:[%s3 + $0x14] sm:$0xf]
        %v1610 = vld [vmem:[%s3 + $0x18] sm:$0xf]
        %v1611 = vld [vmem:[%s3 + $0x1c] sm:$0xf]
        %v1612 = vld [vmem:[%s3 + $0x20] sm:$0xf]
        %v1613 = vld [vmem:[%s3 + $0x24] sm:$0xf]
        %v1614 = vld [vmem:[%s3 + $0x28] sm:$0xf]
        %v1615 = vld [vmem:[%s3 + $0x2c] sm:$0xf]
        %v1616 = vld [vmem:[%s3 + $0x30] sm:$0xf]
        %v1617 = vld [vmem:[%s3 + $0x34] sm:$0xf]
        %v1618 = vld [vmem:[%s3 + $0x38] sm:$0xf]
        %v1619 = vld [vmem:[%s3 + $0x3c] sm:$0xf]
        %v1620 = vld [vmem:[%s4] sm:$0x1]
        %v1622 = vlaneseq
        %v1623 = vshrl.u32 %v1622, 7
        %v1624 = vsub.s32 0, %v1623
        %v1625 = vrot.slane %v1620, %v1624
        %v1643 = vunpack.c.l.b16 %v1588
        %v1644 = vunpack.c.l.b16 %v1589
        %v1645 = vunpack.c.l.b16 %v1590
        %v1646 = vunpack.c.l.b16 %v1591
        %v1647 = vunpack.c.l.b16 %v1592
        %v1648 = vunpack.c.l.b16 %v1593
        %v1649 = vunpack.c.l.b16 %v1594
        %v1650 = vunpack.c.l.b16 %v1595
        %v1651 = vunpack.c.l.b16 %v1596
        %v1652 = vunpack.c.l.b16 %v1597
        %v1653 = vunpack.c.l.b16 %v1598
        %v1654 = vunpack.c.l.b16 %v1599
        %v1655 = vunpack.c.l.b16 %v1600
        %v1656 = vunpack.c.l.b16 %v1601
        %v1657 = vunpack.c.l.b16 %v1602
        %v1658 = vunpack.c.l.b16 %v1603
        %v1659 = vrot.slane %v1644, 7
        %vm1660 = vcmask 1041409
        %v1661 = vsel %vm1660, %v1659, %v1643
        %v1662 = vrot.slane %v1645, 6
        %vm1663 = vcmask 1042434
        %v1664 = vsel %vm1663, %v1662, %v1661
        %v1665 = vrot.slane %v1646, 5
        %vm1666 = vcmask 1043459
        %v1667 = vsel %vm1666, %v1665, %v1664
        %v1668 = vrot.slane %v1647, 4
        %vm1669 = vcmask 1044484
        %v1670 = vsel %vm1669, %v1668, %v1667
        %v1671 = vrot.slane %v1648, 3
        %vm1672 = vcmask 1045509
        %v1673 = vsel %vm1672, %v1671, %v1670
        %v1674 = vrot.slane %v1649, 2
        %vm1675 = vcmask 1046534
        %v1676 = vsel %vm1675, %v1674, %v1673
        %v1677 = vrot.slane %v1650, 1
        %vm1678 = vcmask 1047559
        %v1679 = vsel %vm1678, %v1677, %v1676
        %v1680 = vrot.slane %v1652, 7
        %v1681 = vsel %vm1660, %v1680, %v1651
        %v1682 = vrot.slane %v1653, 6
        %v1683 = vsel %vm1663, %v1682, %v1681
        %v1684 = vrot.slane %v1654, 5
        %v1685 = vsel %vm1666, %v1684, %v1683
        %v1686 = vrot.slane %v1655, 4
        %v1687 = vsel %vm1669, %v1686, %v1685
        %v1688 = vrot.slane %v1656, 3
        %v1689 = vsel %vm1672, %v1688, %v1687
        %v1690 = vrot.slane %v1657, 2
        %v1691 = vsel %vm1675, %v1690, %v1689
        %v1692 = vrot.slane %v1658, 1
        %v1693 = vsel %vm1678, %v1692, %v1691
        %v1694 = vpack.c.b16 %v1693, %v1679
        %v1712 = vunpack.c.l.b16 %v1604
        %v1713 = vunpack.c.l.b16 %v1605
        %v1714 = vunpack.c.l.b16 %v1606
        %v1715 = vunpack.c.l.b16 %v1607
        %v1716 = vunpack.c.l.b16 %v1608
        %v1717 = vunpack.c.l.b16 %v1609
        %v1718 = vunpack.c.l.b16 %v1610
        %v1719 = vunpack.c.l.b16 %v1611
        %v1720 = vunpack.c.l.b16 %v1612
        %v1721 = vunpack.c.l.b16 %v1613
        %v1722 = vunpack.c.l.b16 %v1614
        %v1723 = vunpack.c.l.b16 %v1615
        %v1724 = vunpack.c.l.b16 %v1616
        %v1725 = vunpack.c.l.b16 %v1617
        %v1726 = vunpack.c.l.b16 %v1618
        %v1727 = vunpack.c.l.b16 %v1619
        %v1728 = vpack.c.b16 %v1713, %v1712
        %v1729 = vpack.c.b16 %v1715, %v1714
        %v1730 = vpack.c.b16 %v1717, %v1716
        %v1731 = vpack.c.b16 %v1719, %v1718
        %v1732 = vpack.c.b16 %v1721, %v1720
        %v1733 = vpack.c.b16 %v1723, %v1722
        %v1734 = vpack.c.b16 %v1725, %v1724
        %v1735 = vpack.c.b16 %v1727, %v1726
        %1744 = vmatprep.subr.bf16.mxu0 0
        %1745 = vmatpush1.bf16.msra.mxu0 %v1728
        %1746 = vmatprep.subr.bf16.mxu0 0
        %1747 = vmatpush1.bf16.msra.mxu0 %v1729
        %1748 = vmatprep.subr.bf16.mxu0 0
        %1749 = vmatpush1.bf16.msra.mxu0 %v1730
        %1750 = vmatprep.subr.bf16.mxu0 0
        %1751 = vmatpush1.bf16.msra.mxu0 %v1731
        %1752 = vmatprep.subr.bf16.mxu0 0
        %1753 = vmatpush1.bf16.msra.mxu0 %v1732
        %1754 = vmatprep.subr.bf16.mxu0 0
        %1755 = vmatpush1.bf16.msra.mxu0 %v1733
        %1756 = vmatprep.subr.bf16.mxu0 0
        %1757 = vmatpush1.bf16.msra.mxu0 %v1734
        %1758 = vmatprep.subr.bf16.mxu0 0
        %1759 = vmatpush1.bf16.msra.mxu0 %v1735
        %1760 = vmatprep.subr.bf16.mxu0 0
        %1761 = vmatpush1.bf16.msra.mxu0 0
        %1762 = vmatprep.subr.bf16.mxu0 0
        %1763 = vmatpush1.bf16.msra.mxu0 0
        %1764 = vmatprep.subr.bf16.mxu0 0
        %1765 = vmatpush1.bf16.msra.mxu0 0
        %1766 = vmatprep.subr.bf16.mxu0 0
        %1767 = vmatpush1.bf16.msra.mxu0 0
        %1768 = vmatprep.subr.bf16.mxu0 0
        %1769 = vmatpush1.bf16.msra.mxu0 0
        %1770 = vmatprep.subr.bf16.mxu0 0
        %1771 = vmatpush1.bf16.msra.mxu0 0
        %1772 = vmatprep.subr.bf16.mxu0 0
        %1773 = vmatpush1.bf16.msra.mxu0 0
        %1774 = vmatprep.subr.bf16.mxu0 0
        %1775 = vmatpush1.bf16.msra.mxu0 0
        %1776 = vmatprep.mubr.bf16.mxu0 0
        %1777 = vmatmul.mubr.bf16.gmra.mrb[0].mxu0 %v1694
        %v1778 = vpop.f32.mrb[0].mxu0
        %v1779 = vadd.f32 %v1625, %v1778
        %v1780 = vpop.f32.mrb[0].mxu0
        %v1781 = vpop.f32.mrb[0].mxu0
        %v1782 = vadd.f32 %v1625, %v1781
        %v1783 = vpop.f32.mrb[0].mxu0
        %1784 = vdwg.mxu0
        %v1785 = vmax.f32 %v1779, 0.0
        %v1786 = vmax.f32 %v1782, 0.0
        %v1787 = vld [vmem:[#allocation5] sm:$0xf]
        %v1788 = vld [vmem:[#allocation5 + $0x4] sm:$0xf]
        %v1789 = vld [vmem:[#allocation5 + $0x8] sm:$0xf]
        %v1790 = vld [vmem:[#allocation5 + $0xc] sm:$0xf]
        %v1791 = vld [vmem:[#allocation5 + $0x10] sm:$0xf]
        %v1792 = vld [vmem:[#allocation5 + $0x14] sm:$0xf]
        %v1793 = vld [vmem:[#allocation5 + $0x18] sm:$0xf]
        %v1794 = vld [vmem:[#allocation5 + $0x1c] sm:$0xf]
        %v1795 = vld [vmem:[#allocation5 + $0x20] sm:$0xf]
        %v1796 = vld [vmem:[#allocation5 + $0x24] sm:$0xf]
        %v1797 = vld [vmem:[#allocation5 + $0x28] sm:$0xf]
        %v1798 = vld [vmem:[#allocation5 + $0x2c] sm:$0xf]
        %v1799 = vld [vmem:[#allocation5 + $0x30] sm:$0xf]
        %v1800 = vld [vmem:[#allocation5 + $0x34] sm:$0xf]
        %v1801 = vld [vmem:[#allocation5 + $0x38] sm:$0xf]
        %v1802 = vld [vmem:[#allocation5 + $0x3c] sm:$0xf]
        %v1803 = vld [vmem:[%s6] sm:$0x1]
        %v1805 = vlaneseq
        %v1806 = vshrl.u32 %v1805, 7
        %v1807 = vsub.s32 0, %v1806
        %v1808 = vrot.slane %v1803, %v1807
        %v1826 = vunpack.c.l.b16 %v1787
        %v1827 = vunpack.c.l.b16 %v1788
        %v1828 = vunpack.c.l.b16 %v1789
        %v1829 = vunpack.c.l.b16 %v1790
        %v1830 = vunpack.c.l.b16 %v1791
        %v1831 = vunpack.c.l.b16 %v1792
        %v1832 = vunpack.c.l.b16 %v1793
        %v1833 = vunpack.c.l.b16 %v1794
        %v1834 = vunpack.c.l.b16 %v1795
        %v1835 = vunpack.c.l.b16 %v1796
        %v1836 = vunpack.c.l.b16 %v1797
        %v1837 = vunpack.c.l.b16 %v1798
        %v1838 = vunpack.c.l.b16 %v1799
        %v1839 = vunpack.c.l.b16 %v1800
        %v1840 = vunpack.c.l.b16 %v1801
        %v1841 = vunpack.c.l.b16 %v1802
        %v1842 = vpack.c.b16 %v1827, %v1826
        %v1843 = vpack.c.b16 %v1829, %v1828
        %v1844 = vpack.c.b16 %v1831, %v1830
        %v1845 = vpack.c.b16 %v1833, %v1832
        %v1846 = vpack.c.b16 %v1835, %v1834
        %v1847 = vpack.c.b16 %v1837, %v1836
        %v1848 = vpack.c.b16 %v1839, %v1838
        %v1849 = vpack.c.b16 %v1841, %v1840
        %1858 = vmatprep.subr.bf16.mxu0 0
        %1859 = vmatpush1.bf16.msra.mxu0 %v1842
        %1860 = vmatprep.subr.bf16.mxu0 0
        %1861 = vmatpush1.bf16.msra.mxu0 %v1843
        %1862 = vmatprep.subr.bf16.mxu0 0
        %1863 = vmatpush1.bf16.msra.mxu0 %v1844
        %1864 = vmatprep.subr.bf16.mxu0 0
        %1865 = vmatpush1.bf16.msra.mxu0 %v1845
        %1866 = vmatprep.subr.bf16.mxu0 0
        %1867 = vmatpush1.bf16.msra.mxu0 %v1846
        %1868 = vmatprep.subr.bf16.mxu0 0
        %1869 = vmatpush1.bf16.msra.mxu0 %v1847
        %1870 = vmatprep.subr.bf16.mxu0 0
        %1871 = vmatpush1.bf16.msra.mxu0 %v1848
        %1872 = vmatprep.subr.bf16.mxu0 0
        %1873 = vmatpush1.bf16.msra.mxu0 %v1849
        %1874 = vmatprep.subr.bf16.mxu0 0
        %1875 = vmatpush1.bf16.msra.mxu0 0
        %1876 = vmatprep.subr.bf16.mxu0 0
        %1877 = vmatpush1.bf16.msra.mxu0 0
        %1878 = vmatprep.subr.bf16.mxu0 0
        %1879 = vmatpush1.bf16.msra.mxu0 0
        %1880 = vmatprep.subr.bf16.mxu0 0
        %1881 = vmatpush1.bf16.msra.mxu0 0
        %1882 = vmatprep.subr.bf16.mxu0 0
        %1883 = vmatpush1.bf16.msra.mxu0 0
        %1884 = vmatprep.subr.bf16.mxu0 0
        %1885 = vmatpush1.bf16.msra.mxu0 0
        %1886 = vmatprep.subr.bf16.mxu0 0
        %1887 = vmatpush1.bf16.msra.mxu0 0
        %1888 = vmatprep.subr.bf16.mxu0 0
        %1889 = vmatpush1.bf16.msra.mxu0 0
        %1890 = vmatprep.mubr.bf16.mxu0 0
        %1891 = vmatmul.mubr.bf16.gmra.mrb[0].mxu0 %v1694
        %v1892 = vpop.f32.mrb[0].mxu0
        %v1893 = vadd.f32 %v1808, %v1892
        %v1894 = vpop.f32.mrb[0].mxu0
        %v1895 = vpop.f32.mrb[0].mxu0
        %v1896 = vadd.f32 %v1808, %v1895
        %v1897 = vpop.f32.mrb[0].mxu0
        %1898 = vdwg.mxu0
        %v1899 = vxor.u32 %v1893, 2147483648
        %v1900 = vxor.u32 %v1896, 2147483648
        %v1901 = vmul.f32 %v1899, 1.442695
        %v1902 = vpow.pop %v1901
        %v1903 = vmul.f32 %v1900, 1.442695
        %v1904 = vpow.pop %v1903
        %v1905 = vadd.f32 %v1902, 1.0
        %v1906 = vadd.f32 %v1904, 1.0
        %v1907 = vrcp.pop %v1905
        %v1908 = vmul.f32 1.0, %v1907
        %v1909 = vrcp.pop %v1906
        %v1910 = vmul.f32 1.0, %v1909
        %v1911 = vmul.f32 %v1908, %v1785
        %v1912 = vmul.f32 %v1910, %v1786
        %v1913 = vsub.f32 1.0, %v1908
        %v1914 = vsub.f32 1.0, %v1910
        %v1931 = vrot.slane %v1573, 7
        %v1932 = vsel %vm1660, %v1931, %v1572
        %v1933 = vrot.slane %v1574, 6
        %v1934 = vsel %vm1663, %v1933, %v1932
        %v1935 = vrot.slane %v1575, 5
        %v1936 = vsel %vm1666, %v1935, %v1934
        %v1937 = vrot.slane %v1576, 4
        %v1938 = vsel %vm1669, %v1937, %v1936
        %v1939 = vrot.slane %v1577, 3
        %v1940 = vsel %vm1672, %v1939, %v1938
        %v1941 = vrot.slane %v1578, 2
        %v1942 = vsel %vm1675, %v1941, %v1940
        %v1943 = vrot.slane %v1579, 1
        %v1944 = vsel %vm1678, %v1943, %v1942
        %v1945 = vrot.slane %v1581, 7
        %v1946 = vsel %vm1660, %v1945, %v1580
        %v1947 = vrot.slane %v1582, 6
        %v1948 = vsel %vm1663, %v1947, %v1946
        %v1949 = vrot.slane %v1583, 5
        %v1950 = vsel %vm1666, %v1949, %v1948
        %v1951 = vrot.slane %v1584, 4
        %v1952 = vsel %vm1669, %v1951, %v1950
        %v1953 = vrot.slane %v1585, 3
        %v1954 = vsel %vm1672, %v1953, %v1952
        %v1955 = vrot.slane %v1586, 2
        %v1956 = vsel %vm1675, %v1955, %v1954
        %v1957 = vrot.slane %v1587, 1
        %v1958 = vsel %vm1678, %v1957, %v1956
        %v1961 = vmul.f32 %v1913, %v1944
        %v1962 = vmul.f32 %v1914, %v1958
        %v1963 = vadd.f32 %v1911, %v1961
        %v1964 = vadd.f32 %v1912, %v1962
        %1965 = vst [vmem:[%s302] sm:$0xff] %v1963
        %1966 = vst [vmem:[%s302 + $0x8] sm:$0xff] %v1964
        %s1967 = sand.u32 %s183, 1
        %s1968 = scalar_lea.sflag [#allocation4], %s1967
        %s1969 = sand.u32 %s183, 1
        %s1970 = smul.addr %s1969, 16
        %s1971 = scalar_lea.vmem [#allocation7], %s1970
        // Predicated region
        $region57: #{tpu_custom_call.1} parent=47 // pred_check
          %p1972 = pneg %p193
        $region58: #{tpu_custom_call.1} parent=47 // pred_check_branch
          %1974 = sbr.rel (%p1972) target = $region60
        $region59: #{tpu_custom_call.1} parent=47 // pred_region
          %s1975 = smul.u32 2, %s23
          %s1977 = ssub.s32 256, 256
          %1978 = vsyncadd %s1968, %s1977
          %s1979 = smul.addr %s1975, 128
          %s1980 = scalar_lea.hbm %s7, %s1979
          %s1981 = sshll.u32 %s1971, 4
          %s1982 = int_to_ptr.vmem [resolvable:$true] %s1981
          %1987 = dma.vmem_to_hbm [thread:$0]  %s1982, 256, %s1980, %s1968, 128, 128, 8
        $region60: #{tpu_custom_call.1} parent=47 // pred_fallthru
          _
      $region48: #{tpu_custom_call.1} parent=5 // pred_fallthru
        _
      %p1988 = scmp.le.s32.totalorder 2, %s18
      // Predicated region
      $region61: #{tpu_custom_call.1} parent=5 // pred_check
        %p1989 = pneg %p1988
      $region62: #{tpu_custom_call.1} parent=5 // pred_check_branch
        %1991 = sbr.rel (%p1989) target = $region64
      $region63: #{tpu_custom_call.1} parent=5 // pred_region
        %s1992 = ssub.s32 %s18, 2
        // Predicated region
        $region65: #{tpu_custom_call.1} parent=63 // pred_check
          %p1993 = pneg %p199
        $region66: #{tpu_custom_call.1} parent=63 // pred_check_branch
          %1995 = sbr.rel (%p1993) target = $region68
        $region67: #{tpu_custom_call.1} parent=63 // pred_region
          %s1996 = sand.u32 %s184, 1
          %s1997 = scalar_lea.sflag [#allocation4], %s1996
          %s1998 = sand.u32 %s184, 1
          %s1999 = smul.addr %s1998, 16
          %s2000 = scalar_lea.vmem [#allocation7], %s1999
          %2001 = dma.done %s1997, 256
        $region68: #{tpu_custom_call.1} parent=63 // pred_fallthru
          _
      $region64: #{tpu_custom_call.1} parent=5 // pred_fallthru
        _
    $region6: #{tpu_custom_call.1} parent=1 // loop_footer
      %s22 = sadd.s32 1, %s18
    $region7: #{tpu_custom_call.1} parent=1 // loop_footer_branch
      %17 = sbr.rel target = $region3
    $region8: #{tpu_custom_call.1} parent=1 // loop_exit
      _
    %2002 = vsyncpa [#allocation3], 1
    %s2003 = scalar_lea.sflag [#allocation3], 1
    %2004 = vsyncpa %s2003, 1
    %2005 = vsyncpa [#allocation6], 1
    %2006 = vsyncpa [#allocation4], 1
    %s2007 = scalar_lea.sflag [#allocation4], 1
    %2008 = vsyncpa %s2007, 1

</llo_original>
